<compile_context>
chip_gen: v5e
topology: v5e:2x2
jax: 0.10.0
libtpu: 0.0.40
codegen_flags: <defaults>
</compile_context>

<pallas_src>
import jax
import jax.numpy as jnp
from jax import lax
from jax.experimental import pallas as pl
from jax.experimental.pallas import tpu as pltpu


def _round_up(n, m):
    return (n + m - 1) // m * m


def _sigmoid(x):
    return 1.0 / (1.0 + jnp.exp(-x))


def _gru_layer_kernel(maxlen_ref, len_ref, x_ref, wih_ref, whh_ref, bih_ref, bhh_ref,
                      out_ref, h_scr, gi_scr):
    """One GRU layer over a block of TT timesteps (grid axis 0 = time blocks).

    maxlen_ref : SMEM (1,)          int32    max(lengths)   (scalar prefetch)
    len_ref    : VMEM (Bp, 1)       int32    per-sequence lengths
    x_ref      : VMEM (TT*Bp, Dp)   bfloat16 layer input, row = t*Bp + b
    wih_ref    : VMEM (Dp, 3*Hp)    bfloat16 input weights, gate-blocked [r|z|n]
    whh_ref    : VMEM (Hp, 3*Hp)    bfloat16 hidden weights, gate-blocked [r|z|n]
    bih_ref    : VMEM (1, 3*Hp)     float32
    bhh_ref    : VMEM (1, 3*Hp)     float32
    out_ref    : VMEM (TT*Bp, Hp)   float32  layer output
    h_scr      : VMEM (Bp, Hp)      float32  hidden state carried across time blocks
    gi_scr     : VMEM (TT*Bp, 3*Hp) float32  block-wide input projection
    """
    blk = pl.program_id(0)
    rows, _ = x_ref.shape
    Bp, Hp = h_scr.shape
    TT = rows // Bp
    t0 = blk * TT

    @pl.when(blk == 0)
    def _init():
        h_scr[...] = jnp.zeros_like(h_scr)

    @pl.when(t0 < maxlen_ref[0])
    def _active():
        # One big MXU matmul for the whole time block's input projection.
        gi_scr[...] = jnp.dot(x_ref[...], wih_ref[...],
                              preferred_element_type=jnp.float32) + bih_ref[...]

        whh = whh_ref[...]
        bhh = bhh_ref[...]
        lens = len_ref[...]                            # (Bp, 1) int32

        def step(i, h_prev):
            r0 = pl.multiple_of(i * Bp, Bp)
            g_i = gi_scr[pl.ds(r0, Bp), :]             # (Bp, 3Hp), lane-aligned gates
            gh = jnp.dot(h_prev.astype(jnp.bfloat16), whh,
                         preferred_element_type=jnp.float32) + bhh
            r = _sigmoid(g_i[:, 0:Hp] + gh[:, 0:Hp])
            z = _sigmoid(g_i[:, Hp:2 * Hp] + gh[:, Hp:2 * Hp])
            n = jnp.tanh(g_i[:, 2 * Hp:3 * Hp] + r * gh[:, 2 * Hp:3 * Hp])
            h_new = (1.0 - z) * n + z * h_prev
            valid = lens > (t0 + i)                    # (Bp, 1) -> broadcasts over Hp
            h_upd = jnp.where(valid, h_new, h_prev)
            out_ref[pl.ds(r0, Bp), :] = jnp.where(valid, h_upd, 0.0)
            return h_upd

        h_scr[...] = lax.fori_loop(0, TT, step, h_scr[...], unroll=True)

    @pl.when(t0 >= maxlen_ref[0])
    def _skip():
        # Every sequence is already finished: zero padding out, hidden stays frozen.
        out_ref[...] = jnp.zeros_like(out_ref)


def _gru_layer(maxlen, lengths_b1, x2d, wih, whh, bih, bhh, *, time_block):
    """Run one GRU layer. x2d: (Tp*Bp, Dp) bf16, row-major (t, b). Returns (Tp*Bp, Hp) f32."""
    rows_total, Dp = x2d.shape
    Bp = lengths_b1.shape[0]
    Tp = rows_total // Bp
    Hp = whh.shape[0]
    G = 3 * Hp
    TT = time_block
    nblk = Tp // TT

    return pl.pallas_call(
        _gru_layer_kernel,
        out_shape=jax.ShapeDtypeStruct((Tp * Bp, Hp), jnp.float32),
        grid_spec=pltpu.PrefetchScalarGridSpec(
            num_scalar_prefetch=1,                                 # maxlen -> SMEM
            grid=(nblk,),
            in_specs=[
                pl.BlockSpec((Bp, 1), lambda b, ml: (0, 0)),       # lengths
                pl.BlockSpec((TT * Bp, Dp), lambda b, ml: (b, 0)), # x time block
                pl.BlockSpec((Dp, G), lambda b, ml: (0, 0)),       # W_ih^T (gate-blocked)
                pl.BlockSpec((Hp, G), lambda b, ml: (0, 0)),       # W_hh^T (gate-blocked)
                pl.BlockSpec((1, G), lambda b, ml: (0, 0)),        # b_ih
                pl.BlockSpec((1, G), lambda b, ml: (0, 0)),        # b_hh
            ],
            out_specs=pl.BlockSpec((TT * Bp, Hp), lambda b, ml: (b, 0)),
            scratch_shapes=[
                pltpu.VMEM((Bp, Hp), jnp.float32),                 # hidden state carry
                pltpu.VMEM((TT * Bp, G), jnp.float32),             # block input projection
            ],
        ),
        compiler_params=pltpu.CompilerParams(
            dimension_semantics=("arbitrary",)),                   # time carries hidden state
    )(maxlen, lengths_b1, x2d, wih, whh, bih, bhh)


def _pack_gate_weight(w, in_pad, h_pad):
    """PyTorch (3H, Din) gate-stacked weight -> (in_pad, 3*h_pad) transposed and zero
    padded, with each gate [r|z|n] starting at a lane-aligned column offset g*h_pad."""
    three_h, din = w.shape
    h = three_h // 3
    wt = jnp.transpose(w).astype(jnp.float32)                      # (Din, 3H)
    blocks = [jnp.pad(wt[:, g * h:(g + 1) * h],
                      ((0, in_pad - din), (0, h_pad - h))) for g in range(3)]
    return jnp.concatenate(blocks, axis=1)


def _pack_gate_bias(b, h_pad):
    h = b.shape[0] // 3
    blocks = [jnp.pad(b[g * h:(g + 1) * h].astype(jnp.float32), (0, h_pad - h))
              for g in range(3)]
    return jnp.concatenate(blocks).reshape(1, 3 * h_pad)


@jax.jit
def state_transition_forward(x_btd, lengths, params):
    """Equivalent of StateTransitionNetwork.forward on a padded batch.

    x_btd   : (B, T, n_items) float32 padded histories (batch_first, like PyTorch)
    lengths : (B,) int valid lengths
    params  : tuple of (w_ih, w_hh, b_ih, b_hh) per layer (PyTorch shapes/gate order)
    returns : (output (B, T, H) float32, lengths (B,))
    """
    B, T, D = x_btd.shape
    H = params[0][1].shape[1]                 # w_hh: (3H, H)
    Bp = _round_up(B, 8)                      # sublane-aligned batch
    Hp = _round_up(H, 128)                    # lane-aligned hidden (per gate)
    Dp = _round_up(D, 128)                    # lane-aligned input features
    TT = min(32, T)                           # timesteps per grid block
    Tp = _round_up(T, TT)

    # Time-major, padded, flattened to (Tp*Bp, Dp) so every store is lane/sublane-dense.
    x = jnp.transpose(x_btd, (1, 0, 2)).astype(jnp.float32)        # (T, B, D)
    x = jnp.pad(x, ((0, Tp - T), (0, Bp - B), (0, Dp - D)))
    lengths_i = jnp.pad(lengths.astype(jnp.int32), (0, Bp - B))    # padded rows: length 0
    lengths_b1 = lengths_i.reshape(Bp, 1)
    maxlen = jnp.max(lengths_i).reshape(1)

    h_in = x.reshape(Tp * Bp, Dp).astype(jnp.bfloat16)
    out2d = None
    for li, (w_ih, w_hh, b_ih, b_hh) in enumerate(params):
        in_pad = Dp if li == 0 else Hp
        wih = _pack_gate_weight(w_ih, in_pad, Hp).astype(jnp.bfloat16)
        whh = _pack_gate_weight(w_hh, Hp, Hp).astype(jnp.bfloat16)
        bih = _pack_gate_bias(b_ih, Hp)
        bhh = _pack_gate_bias(b_hh, Hp)
        out2d = _gru_layer(maxlen, lengths_b1, h_in, wih, whh, bih, bhh,
                           time_block=TT)
        h_in = out2d.astype(jnp.bfloat16)     # input to the next layer

    out = out2d.reshape(Tp, Bp, Hp)
    out = jnp.transpose(out, (1, 0, 2))[:B, :T, :H]
    return out, lengths


def init_gru_params(key, input_size, hidden_size, num_layers):
    """PyTorch nn.GRU default init: U(-1/sqrt(H), 1/sqrt(H)), gate order (r, z, n)."""
    k = 1.0 / jnp.sqrt(jnp.array(hidden_size, jnp.float32))
    params = []
    d = input_size
    for _ in range(num_layers):
        key, k1, k2, k3, k4 = jax.random.split(key, 5)
        w_ih = jax.random.uniform(k1, (3 * hidden_size, d), jnp.float32, -k, k)
        w_hh = jax.random.uniform(k2, (3 * hidden_size, hidden_size), jnp.float32, -k, k)
        b_ih = jax.random.uniform(k3, (3 * hidden_size,), jnp.float32, -k, k)
        b_hh = jax.random.uniform(k4, (3 * hidden_size,), jnp.float32, -k, k)
        params.append((w_ih, w_hh, b_ih, b_hh))
        d = hidden_size
    return tuple(params)


def _reference_forward(x_btd, lengths, params):
    """Pure-JAX reference with the same bf16-matmul / f32-gate math for the check."""
    B, T, _ = x_btd.shape
    inp = x_btd.astype(jnp.float32)
    for (w_ih, w_hh, b_ih, b_hh) in params:
        H = w_hh.shape[1]
        wih_b = jnp.transpose(w_ih).astype(jnp.bfloat16)
        whh_b = jnp.transpose(w_hh).astype(jnp.bfloat16)
        h = jnp.zeros((B, H), jnp.float32)
        outs = []
        for t in range(T):
            x_t = inp[:, t, :].astype(jnp.bfloat16)
            gi = jnp.dot(x_t, wih_b, preferred_element_type=jnp.float32) + b_ih
            gh = jnp.dot(h.astype(jnp.bfloat16), whh_b,
                         preferred_element_type=jnp.float32) + b_hh
            r = jax.nn.sigmoid(gi[:, :H] + gh[:, :H])
            z = jax.nn.sigmoid(gi[:, H:2 * H] + gh[:, H:2 * H])
            n = jnp.tanh(gi[:, 2 * H:] + r * gh[:, 2 * H:])
            h_new = (1.0 - z) * n + z * h
            valid = (lengths > t)[:, None]
            h = jnp.where(valid, h_new, h)
            outs.append(jnp.where(valid, h, 0.0))
        inp = jnp.stack(outs, axis=1)
    return inp


if __name__ == "__main__":
    # Small config consistent with the module: n_items (= rnn input size), GRU(hidden, layers).
    n_items = 8
    hidden_size = 32
    num_layers = 2
    B, T = 2, 8

    key = jax.random.PRNGKey(0)
    key, kx = jax.random.split(key)
    # Padded item-history features (what the PackedSequence was built from).
    x = jax.random.normal(kx, (B, T, n_items), jnp.float32)
    lengths = jnp.array([8, 5], jnp.int32)
    # Zero out padding positions, as pack_padded_sequence ignores them anyway.
    t_idx = jnp.arange(T)[None, :, None]
    x = jnp.where(t_idx < lengths[:, None, None], x, 0.0)

    params = init_gru_params(key, n_items, hidden_size, num_layers)

    out, out_lengths = state_transition_forward(x, lengths, params)
    out = jax.block_until_ready(out)

    ref = _reference_forward(x, lengths, params)
    assert out.shape == (B, T, hidden_size)
    assert jnp.allclose(out, ref, atol=2e-2, rtol=2e-2), "mismatch vs reference GRU"
    assert jnp.array_equal(out_lengths, lengths)

    print("KERNEL_OK")
</pallas_src>

<mosaic_0001>
module attributes {stable_mosaic.version = 11 : i64} {
  func.func @_gru_layer_kernel(%arg0: i32, %arg1: memref<1xi32, #tpu.memory_space<smem>>, %arg2: memref<8x1xi32, #tpu.memory_space<vmem>>, %arg3: memref<64x128xbf16, #tpu.memory_space<vmem>>, %arg4: memref<128x384xbf16, #tpu.memory_space<vmem>>, %arg5: memref<128x384xbf16, #tpu.memory_space<vmem>>, %arg6: memref<1x384xf32, #tpu.memory_space<vmem>>, %arg7: memref<1x384xf32, #tpu.memory_space<vmem>>, %arg8: memref<64x128xf32, #tpu.memory_space<vmem>>, %arg9: memref<8x128xf32, #tpu.memory_space<vmem>>, %arg10: memref<64x384xf32, #tpu.memory_space<vmem>>) attributes {dimension_semantics = [#tpu.dimension_semantics<arbitrary>], iteration_bounds = array<i64: 1>, scalar_prefetch = 1 : i64, scratch_operands = 2 : i64, tpu.core_type = #tpu.core_type<tc>, window_params = [{pipeline_mode = #tpu.pipeline_mode<synchronous>, transform_indices = @transform_0, window_bounds = array<i64: 8, 1>}, {transform_indices = @transform_1, window_bounds = array<i64: 64, 128>}, {pipeline_mode = #tpu.pipeline_mode<synchronous>, transform_indices = @transform_2, window_bounds = array<i64: 128, 384>}, {pipeline_mode = #tpu.pipeline_mode<synchronous>, transform_indices = @transform_3, window_bounds = array<i64: 128, 384>}, {pipeline_mode = #tpu.pipeline_mode<synchronous>, transform_indices = @transform_4, window_bounds = array<i64: 1, 384>}, {pipeline_mode = #tpu.pipeline_mode<synchronous>, transform_indices = @transform_5, window_bounds = array<i64: 1, 384>}, {transform_indices = @transform_6, window_bounds = array<i64: 64, 128>}]} {
    %c8_i32 = arith.constant 8 : i32
    %0 = arith.muli %arg0, %c8_i32 : i32
    %c0_i32 = arith.constant 0 : i32
    %1 = arith.cmpi eq, %arg0, %c0_i32 : i32
    %2 = arith.extui %1 : i1 to i32
    %c0_i32_0 = arith.constant 0 : i32
    %3 = arith.cmpi ne, %2, %c0_i32_0 : i32
    scf.if %3 {
      %cst = arith.constant 0.000000e+00 : f32
      %12 = vector.broadcast %cst : f32 to vector<8x128xf32>
      %c0_4 = arith.constant 0 : index
      %c0_5 = arith.constant 0 : index
      %13 = vector.load %arg9[%c0_4, %c0_5] : memref<8x128xf32, #tpu.memory_space<vmem>>, vector<8x128xf32>
      tpu.vector_store %arg9[%c0_4, %c0_5], %12 {strides = array<i32>} : memref<8x128xf32, #tpu.memory_space<vmem>>, vector<8x128xf32>,
    } else {
    }
    %c0 = arith.constant 0 : index
    %4 = memref.load %arg1[%c0] : memref<1xi32, #tpu.memory_space<smem>>
    %5 = arith.cmpi slt, %0, %4 : i32
    %6 = arith.extui %5 : i1 to i32
    %c0_i32_1 = arith.constant 0 : i32
    %7 = arith.cmpi ne, %6, %c0_i32_1 : i32
    scf.if %7 {
      %c0_4 = arith.constant 0 : index
      %c0_5 = arith.constant 0 : index
      %12 = vector.load %arg3[%c0_4, %c0_5] : memref<64x128xbf16, #tpu.memory_space<vmem>>, vector<64x128xbf16>
      %c0_6 = arith.constant 0 : index
      %c0_7 = arith.constant 0 : index
      %13 = vector.load %arg4[%c0_6, %c0_7] : memref<128x384xbf16, #tpu.memory_space<vmem>>, vector<128x384xbf16>
      %cst = arith.constant dense<0.000000e+00> : vector<64x384xf32>
      %14 = tpu.matmul %12, %13, %cst {dimension_numbers = #tpu.dot_dimension_numbers<[1], [0], [0], [1], [0, 0, 1, 1], [], []>} : vector<64x128xbf16>, vector<128x384xbf16>, vector<64x384xf32> -> vector<64x384xf32>
      %c0_8 = arith.constant 0 : index
      %c0_9 = arith.constant 0 : index
      %15 = vector.load %arg6[%c0_8, %c0_9] : memref<1x384xf32, #tpu.memory_space<vmem>>, vector<1x384xf32>
      %16 = vector.broadcast %15 : vector<1x384xf32> to vector<64x384xf32>
      %17 = arith.addf %14, %16 : vector<64x384xf32>
      %c0_10 = arith.constant 0 : index
      %c0_11 = arith.constant 0 : index
      %18 = vector.load %arg10[%c0_10, %c0_11] : memref<64x384xf32, #tpu.memory_space<vmem>>, vector<64x384xf32>
      tpu.vector_store %arg10[%c0_10, %c0_11], %17 {strides = array<i32>} : memref<64x384xf32, #tpu.memory_space<vmem>>, vector<64x384xf32>,
      %c0_12 = arith.constant 0 : index
      %c0_13 = arith.constant 0 : index
      %19 = vector.load %arg5[%c0_12, %c0_13] : memref<128x384xbf16, #tpu.memory_space<vmem>>, vector<128x384xbf16>
      %c0_14 = arith.constant 0 : index
      %c0_15 = arith.constant 0 : index
      %20 = vector.load %arg7[%c0_14, %c0_15] : memref<1x384xf32, #tpu.memory_space<vmem>>, vector<1x384xf32>
      %c0_16 = arith.constant 0 : index
      %c0_17 = arith.constant 0 : index
      %21 = vector.load %arg2[%c0_16, %c0_17] : memref<8x1xi32, #tpu.memory_space<vmem>>, vector<8x1xi32>
      %c0_18 = arith.constant 0 : index
      %c0_19 = arith.constant 0 : index
      %22 = vector.load %arg9[%c0_18, %c0_19] : memref<8x128xf32, #tpu.memory_space<vmem>>, vector<8x128xf32>
      %c0_i32_20 = arith.constant 0 : i32
      %c8_i32_21 = arith.constant 8 : i32
      %23 = arith.muli %c0_i32_20, %c8_i32_21 : i32
      %24 = tpu.assume_multiple %23, 8 : i32
      %25 = arith.index_cast %24 : i32 to index
      %c0_22 = arith.constant 0 : index
      %26 = vector.load %arg10[%25, %c0_22] : memref<64x384xf32, #tpu.memory_space<vmem>>, vector<8x384xf32>
      %27 = arith.truncf %22 : vector<8x128xf32> to vector<8x128xbf16>
      %cst_23 = arith.constant dense<0.000000e+00> : vector<8x384xf32>
      %28 = tpu.matmul %27, %19, %cst_23 {dimension_numbers = #tpu.dot_dimension_numbers<[1], [0], [0], [1], [0, 0, 1, 1], [], []>} : vector<8x128xbf16>, vector<128x384xbf16>, vector<8x384xf32> -> vector<8x384xf32>
      %29 = vector.broadcast %20 : vector<1x384xf32> to vector<8x384xf32>
      %30 = arith.addf %28, %29 : vector<8x384xf32>
      %31 = vector.extract_strided_slice %26 {offsets = [0, 0], sizes = [8, 128], strides = [1, 1]} : vector<8x384xf32> to vector<8x128xf32>
      %32 = vector.extract_strided_slice %30 {offsets = [0, 0], sizes = [8, 128], strides = [1, 1]} : vector<8x384xf32> to vector<8x128xf32>
      %33 = arith.addf %31, %32 : vector<8x128xf32>
      %cst_24 = arith.constant 0.000000e+00 : f32
      %34 = vector.broadcast %cst_24 : f32 to vector<8x128xf32>
      %35 = arith.subf %34, %33 : vector<8x128xf32>
      %36 = math.exp %35 : vector<8x128xf32>
      %cst_25 = arith.constant 1.000000e+00 : f32
      %37 = vector.broadcast %cst_25 : f32 to vector<8x128xf32>
      %38 = arith.addf %37, %36 : vector<8x128xf32>
      %cst_26 = arith.constant 1.000000e+00 : f32
      %39 = vector.broadcast %cst_26 : f32 to vector<8x128xf32>
      %40 = arith.divf %39, %38 : vector<8x128xf32>
      %41 = vector.extract_strided_slice %26 {offsets = [0, 128], sizes = [8, 128], strides = [1, 1]} : vector<8x384xf32> to vector<8x128xf32>
      %42 = vector.extract_strided_slice %30 {offsets = [0, 128], sizes = [8, 128], strides = [1, 1]} : vector<8x384xf32> to vector<8x128xf32>
      %43 = arith.addf %41, %42 : vector<8x128xf32>
      %cst_27 = arith.constant 0.000000e+00 : f32
      %44 = vector.broadcast %cst_27 : f32 to vector<8x128xf32>
      %45 = arith.subf %44, %43 : vector<8x128xf32>
      %46 = math.exp %45 : vector<8x128xf32>
      %cst_28 = arith.constant 1.000000e+00 : f32
      %47 = vector.broadcast %cst_28 : f32 to vector<8x128xf32>
      %48 = arith.addf %47, %46 : vector<8x128xf32>
      %cst_29 = arith.constant 1.000000e+00 : f32
      %49 = vector.broadcast %cst_29 : f32 to vector<8x128xf32>
      %50 = arith.divf %49, %48 : vector<8x128xf32>
      %51 = vector.extract_strided_slice %26 {offsets = [0, 256], sizes = [8, 128], strides = [1, 1]} : vector<8x384xf32> to vector<8x128xf32>
      %52 = vector.extract_strided_slice %30 {offsets = [0, 256], sizes = [8, 128], strides = [1, 1]} : vector<8x384xf32> to vector<8x128xf32>
      %53 = arith.mulf %40, %52 : vector<8x128xf32>
      %54 = arith.addf %51, %53 : vector<8x128xf32>
      %55 = math.tanh %54 : vector<8x128xf32>
      %cst_30 = arith.constant 1.000000e+00 : f32
      %56 = vector.broadcast %cst_30 : f32 to vector<8x128xf32>
      %57 = arith.subf %56, %50 : vector<8x128xf32>
      %58 = arith.mulf %57, %55 : vector<8x128xf32>
      %59 = arith.mulf %50, %22 : vector<8x128xf32>
      %60 = arith.addf %58, %59 : vector<8x128xf32>
      %61 = arith.addi %0, %c0_i32_20 : i32
      %62 = vector.broadcast %61 : i32 to vector<8x1xi32>
      %63 = arith.cmpi sgt, %21, %62 : vector<8x1xi32>
      %64 = vector.shape_cast %63 : vector<8x1xi1> to vector<8x1xi1>
      %65 = vector.broadcast %64 : vector<8x1xi1> to vector<8x128xi1>
      %66 = arith.select %65, %60, %22 : vector<8x128xi1>, vector<8x128xf32>
      %cst_31 = arith.constant 0.000000e+00 : f32
      %67 = vector.shape_cast %63 : vector<8x1xi1> to vector<8x1xi1>
      %68 = vector.broadcast %67 : vector<8x1xi1> to vector<8x128xi1>
      %69 = vector.broadcast %cst_31 : f32 to vector<8x128xf32>
      %70 = arith.select %68, %66, %69 : vector<8x128xi1>, vector<8x128xf32>
      %71 = arith.index_cast %24 : i32 to index
      %c0_32 = arith.constant 0 : index
      %72 = vector.load %arg8[%71, %c0_32] : memref<64x128xf32, #tpu.memory_space<vmem>>, vector<8x128xf32>
      tpu.vector_store %arg8[%71, %c0_32], %70 {strides = array<i32>} : memref<64x128xf32, #tpu.memory_space<vmem>>, vector<8x128xf32>,
      %c1_i32 = arith.constant 1 : i32
      %c8_i32_33 = arith.constant 8 : i32
      %73 = arith.muli %c1_i32, %c8_i32_33 : i32
      %74 = tpu.assume_multiple %73, 8 : i32
      %75 = arith.index_cast %74 : i32 to index
      %c0_34 = arith.constant 0 : index
      %76 = vector.load %arg10[%75, %c0_34] : memref<64x384xf32, #tpu.memory_space<vmem>>, vector<8x384xf32>
      %77 = arith.truncf %66 : vector<8x128xf32> to vector<8x128xbf16>
      %cst_35 = arith.constant dense<0.000000e+00> : vector<8x384xf32>
      %78 = tpu.matmul %77, %19, %cst_35 {dimension_numbers = #tpu.dot_dimension_numbers<[1], [0], [0], [1], [0, 0, 1, 1], [], []>} : vector<8x128xbf16>, vector<128x384xbf16>, vector<8x384xf32> -> vector<8x384xf32>
      %79 = vector.broadcast %20 : vector<1x384xf32> to vector<8x384xf32>
      %80 = arith.addf %78, %79 : vector<8x384xf32>
      %81 = vector.extract_strided_slice %76 {offsets = [0, 0], sizes = [8, 128], strides = [1, 1]} : vector<8x384xf32> to vector<8x128xf32>
      %82 = vector.extract_strided_slice %80 {offsets = [0, 0], sizes = [8, 128], strides = [1, 1]} : vector<8x384xf32> to vector<8x128xf32>
      %83 = arith.addf %81, %82 : vector<8x128xf32>
      %cst_36 = arith.constant 0.000000e+00 : f32
      %84 = vector.broadcast %cst_36 : f32 to vector<8x128xf32>
      %85 = arith.subf %84, %83 : vector<8x128xf32>
      %86 = math.exp %85 : vector<8x128xf32>
      %cst_37 = arith.constant 1.000000e+00 : f32
      %87 = vector.broadcast %cst_37 : f32 to vector<8x128xf32>
      %88 = arith.addf %87, %86 : vector<8x128xf32>
      %cst_38 = arith.constant 1.000000e+00 : f32
      %89 = vector.broadcast %cst_38 : f32 to vector<8x128xf32>
      %90 = arith.divf %89, %88 : vector<8x128xf32>
      %91 = vector.extract_strided_slice %76 {offsets = [0, 128], sizes = [8, 128], strides = [1, 1]} : vector<8x384xf32> to vector<8x128xf32>
      %92 = vector.extract_strided_slice %80 {offsets = [0, 128], sizes = [8, 128], strides = [1, 1]} : vector<8x384xf32> to vector<8x128xf32>
      %93 = arith.addf %91, %92 : vector<8x128xf32>
      %cst_39 = arith.constant 0.000000e+00 : f32
      %94 = vector.broadcast %cst_39 : f32 to vector<8x128xf32>
      %95 = arith.subf %94, %93 : vector<8x128xf32>
      %96 = math.exp %95 : vector<8x128xf32>
      %cst_40 = arith.constant 1.000000e+00 : f32
      %97 = vector.broadcast %cst_40 : f32 to vector<8x128xf32>
      %98 = arith.addf %97, %96 : vector<8x128xf32>
      %cst_41 = arith.constant 1.000000e+00 : f32
      %99 = vector.broadcast %cst_41 : f32 to vector<8x128xf32>
      %100 = arith.divf %99, %98 : vector<8x128xf32>
      %101 = vector.extract_strided_slice %76 {offsets = [0, 256], sizes = [8, 128], strides = [1, 1]} : vector<8x384xf32> to vector<8x128xf32>
      %102 = vector.extract_strided_slice %80 {offsets = [0, 256], sizes = [8, 128], strides = [1, 1]} : vector<8x384xf32> to vector<8x128xf32>
      %103 = arith.mulf %90, %102 : vector<8x128xf32>
      %104 = arith.addf %101, %103 : vector<8x128xf32>
      %105 = math.tanh %104 : vector<8x128xf32>
      %cst_42 = arith.constant 1.000000e+00 : f32
      %106 = vector.broadcast %cst_42 : f32 to vector<8x128xf32>
      %107 = arith.subf %106, %100 : vector<8x128xf32>
      %108 = arith.mulf %107, %105 : vector<8x128xf32>
      %109 = arith.mulf %100, %66 : vector<8x128xf32>
      %110 = arith.addf %108, %109 : vector<8x128xf32>
      %111 = arith.addi %0, %c1_i32 : i32
      %112 = vector.broadcast %111 : i32 to vector<8x1xi32>
      %113 = arith.cmpi sgt, %21, %112 : vector<8x1xi32>
      %114 = vector.shape_cast %113 : vector<8x1xi1> to vector<8x1xi1>
      %115 = vector.broadcast %114 : vector<8x1xi1> to vector<8x128xi1>
      %116 = arith.select %115, %110, %66 : vector<8x128xi1>, vector<8x128xf32>
      %cst_43 = arith.constant 0.000000e+00 : f32
      %117 = vector.shape_cast %113 : vector<8x1xi1> to vector<8x1xi1>
      %118 = vector.broadcast %117 : vector<8x1xi1> to vector<8x128xi1>
      %119 = vector.broadcast %cst_43 : f32 to vector<8x128xf32>
      %120 = arith.select %118, %116, %119 : vector<8x128xi1>, vector<8x128xf32>
      %121 = arith.index_cast %74 : i32 to index
      %c0_44 = arith.constant 0 : index
      %122 = vector.load %arg8[%121, %c0_44] : memref<64x128xf32, #tpu.memory_space<vmem>>, vector<8x128xf32>
      tpu.vector_store %arg8[%121, %c0_44], %120 {strides = array<i32>} : memref<64x128xf32, #tpu.memory_space<vmem>>, vector<8x128xf32>,
      %c2_i32 = arith.constant 2 : i32
      %c8_i32_45 = arith.constant 8 : i32
      %123 = arith.muli %c2_i32, %c8_i32_45 : i32
      %124 = tpu.assume_multiple %123, 8 : i32
      %125 = arith.index_cast %124 : i32 to index
      %c0_46 = arith.constant 0 : index
      %126 = vector.load %arg10[%125, %c0_46] : memref<64x384xf32, #tpu.memory_space<vmem>>, vector<8x384xf32>
      %127 = arith.truncf %116 : vector<8x128xf32> to vector<8x128xbf16>
      %cst_47 = arith.constant dense<0.000000e+00> : vector<8x384xf32>
      %128 = tpu.matmul %127, %19, %cst_47 {dimension_numbers = #tpu.dot_dimension_numbers<[1], [0], [0], [1], [0, 0, 1, 1], [], []>} : vector<8x128xbf16>, vector<128x384xbf16>, vector<8x384xf32> -> vector<8x384xf32>
      %129 = vector.broadcast %20 : vector<1x384xf32> to vector<8x384xf32>
      %130 = arith.addf %128, %129 : vector<8x384xf32>
      %131 = vector.extract_strided_slice %126 {offsets = [0, 0], sizes = [8, 128], strides = [1, 1]} : vector<8x384xf32> to vector<8x128xf32>
      %132 = vector.extract_strided_slice %130 {offsets = [0, 0], sizes = [8, 128], strides = [1, 1]} : vector<8x384xf32> to vector<8x128xf32>
      %133 = arith.addf %131, %132 : vector<8x128xf32>
      %cst_48 = arith.constant 0.000000e+00 : f32
      %134 = vector.broadcast %cst_48 : f32 to vector<8x128xf32>
      %135 = arith.subf %134, %133 : vector<8x128xf32>
      %136 = math.exp %135 : vector<8x128xf32>
      %cst_49 = arith.constant 1.000000e+00 : f32
      %137 = vector.broadcast %cst_49 : f32 to vector<8x128xf32>
      %138 = arith.addf %137, %136 : vector<8x128xf32>
      %cst_50 = arith.constant 1.000000e+00 : f32
      %139 = vector.broadcast %cst_50 : f32 to vector<8x128xf32>
      %140 = arith.divf %139, %138 : vector<8x128xf32>
      %141 = vector.extract_strided_slice %126 {offsets = [0, 128], sizes = [8, 128], strides = [1, 1]} : vector<8x384xf32> to vector<8x128xf32>
      %142 = vector.extract_strided_slice %130 {offsets = [0, 128], sizes = [8, 128], strides = [1, 1]} : vector<8x384xf32> to vector<8x128xf32>
      %143 = arith.addf %141, %142 : vector<8x128xf32>
      %cst_51 = arith.constant 0.000000e+00 : f32
      %144 = vector.broadcast %cst_51 : f32 to vector<8x128xf32>
      %145 = arith.subf %144, %143 : vector<8x128xf32>
      %146 = math.exp %145 : vector<8x128xf32>
      %cst_52 = arith.constant 1.000000e+00 : f32
      %147 = vector.broadcast %cst_52 : f32 to vector<8x128xf32>
      %148 = arith.addf %147, %146 : vector<8x128xf32>
      %cst_53 = arith.constant 1.000000e+00 : f32
      %149 = vector.broadcast %cst_53 : f32 to vector<8x128xf32>
      %150 = arith.divf %149, %148 : vector<8x128xf32>
      %151 = vector.extract_strided_slice %126 {offsets = [0, 256], sizes = [8, 128], strides = [1, 1]} : vector<8x384xf32> to vector<8x128xf32>
      %152 = vector.extract_strided_slice %130 {offsets = [0, 256], sizes = [8, 128], strides = [1, 1]} : vector<8x384xf32> to vector<8x128xf32>
      %153 = arith.mulf %140, %152 : vector<8x128xf32>
      %154 = arith.addf %151, %153 : vector<8x128xf32>
      %155 = math.tanh %154 : vector<8x128xf32>
      %cst_54 = arith.constant 1.000000e+00 : f32
      %156 = vector.broadcast %cst_54 : f32 to vector<8x128xf32>
      %157 = arith.subf %156, %150 : vector<8x128xf32>
      %158 = arith.mulf %157, %155 : vector<8x128xf32>
      %159 = arith.mulf %150, %116 : vector<8x128xf32>
      %160 = arith.addf %158, %159 : vector<8x128xf32>
      %161 = arith.addi %0, %c2_i32 : i32
      %162 = vector.broadcast %161 : i32 to vector<8x1xi32>
      %163 = arith.cmpi sgt, %21, %162 : vector<8x1xi32>
      %164 = vector.shape_cast %163 : vector<8x1xi1> to vector<8x1xi1>
      %165 = vector.broadcast %164 : vector<8x1xi1> to vector<8x128xi1>
      %166 = arith.select %165, %160, %116 : vector<8x128xi1>, vector<8x128xf32>
      %cst_55 = arith.constant 0.000000e+00 : f32
      %167 = vector.shape_cast %163 : vector<8x1xi1> to vector<8x1xi1>
      %168 = vector.broadcast %167 : vector<8x1xi1> to vector<8x128xi1>
      %169 = vector.broadcast %cst_55 : f32 to vector<8x128xf32>
      %170 = arith.select %168, %166, %169 : vector<8x128xi1>, vector<8x128xf32>
      %171 = arith.index_cast %124 : i32 to index
      %c0_56 = arith.constant 0 : index
      %172 = vector.load %arg8[%171, %c0_56] : memref<64x128xf32, #tpu.memory_space<vmem>>, vector<8x128xf32>
      tpu.vector_store %arg8[%171, %c0_56], %170 {strides = array<i32>} : memref<64x128xf32, #tpu.memory_space<vmem>>, vector<8x128xf32>,
      %c3_i32 = arith.constant 3 : i32
      %c8_i32_57 = arith.constant 8 : i32
      %173 = arith.muli %c3_i32, %c8_i32_57 : i32
      %174 = tpu.assume_multiple %173, 8 : i32
      %175 = arith.index_cast %174 : i32 to index
      %c0_58 = arith.constant 0 : index
      %176 = vector.load %arg10[%175, %c0_58] : memref<64x384xf32, #tpu.memory_space<vmem>>, vector<8x384xf32>
      %177 = arith.truncf %166 : vector<8x128xf32> to vector<8x128xbf16>
      %cst_59 = arith.constant dense<0.000000e+00> : vector<8x384xf32>
      %178 = tpu.matmul %177, %19, %cst_59 {dimension_numbers = #tpu.dot_dimension_numbers<[1], [0], [0], [1], [0, 0, 1, 1], [], []>} : vector<8x128xbf16>, vector<128x384xbf16>, vector<8x384xf32> -> vector<8x384xf32>
      %179 = vector.broadcast %20 : vector<1x384xf32> to vector<8x384xf32>
      %180 = arith.addf %178, %179 : vector<8x384xf32>
      %181 = vector.extract_strided_slice %176 {offsets = [0, 0], sizes = [8, 128], strides = [1, 1]} : vector<8x384xf32> to vector<8x128xf32>
      %182 = vector.extract_strided_slice %180 {offsets = [0, 0], sizes = [8, 128], strides = [1, 1]} : vector<8x384xf32> to vector<8x128xf32>
      %183 = arith.addf %181, %182 : vector<8x128xf32>
      %cst_60 = arith.constant 0.000000e+00 : f32
      %184 = vector.broadcast %cst_60 : f32 to vector<8x128xf32>
      %185 = arith.subf %184, %183 : vector<8x128xf32>
      %186 = math.exp %185 : vector<8x128xf32>
      %cst_61 = arith.constant 1.000000e+00 : f32
      %187 = vector.broadcast %cst_61 : f32 to vector<8x128xf32>
      %188 = arith.addf %187, %186 : vector<8x128xf32>
      %cst_62 = arith.constant 1.000000e+00 : f32
      %189 = vector.broadcast %cst_62 : f32 to vector<8x128xf32>
      %190 = arith.divf %189, %188 : vector<8x128xf32>
      %191 = vector.extract_strided_slice %176 {offsets = [0, 128], sizes = [8, 128], strides = [1, 1]} : vector<8x384xf32> to vector<8x128xf32>
      %192 = vector.extract_strided_slice %180 {offsets = [0, 128], sizes = [8, 128], strides = [1, 1]} : vector<8x384xf32> to vector<8x128xf32>
      %193 = arith.addf %191, %192 : vector<8x128xf32>
      %cst_63 = arith.constant 0.000000e+00 : f32
      %194 = vector.broadcast %cst_63 : f32 to vector<8x128xf32>
      %195 = arith.subf %194, %193 : vector<8x128xf32>
      %196 = math.exp %195 : vector<8x128xf32>
      %cst_64 = arith.constant 1.000000e+00 : f32
      %197 = vector.broadcast %cst_64 : f32 to vector<8x128xf32>
      %198 = arith.addf %197, %196 : vector<8x128xf32>
      %cst_65 = arith.constant 1.000000e+00 : f32
      %199 = vector.broadcast %cst_65 : f32 to vector<8x128xf32>
      %200 = arith.divf %199, %198 : vector<8x128xf32>
      %201 = vector.extract_strided_slice %176 {offsets = [0, 256], sizes = [8, 128], strides = [1, 1]} : vector<8x384xf32> to vector<8x128xf32>
      %202 = vector.extract_strided_slice %180 {offsets = [0, 256], sizes = [8, 128], strides = [1, 1]} : vector<8x384xf32> to vector<8x128xf32>
      %203 = arith.mulf %190, %202 : vector<8x128xf32>
      %204 = arith.addf %201, %203 : vector<8x128xf32>
      %205 = math.tanh %204 : vector<8x128xf32>
      %cst_66 = arith.constant 1.000000e+00 : f32
      %206 = vector.broadcast %cst_66 : f32 to vector<8x128xf32>
      %207 = arith.subf %206, %200 : vector<8x128xf32>
      %208 = arith.mulf %207, %205 : vector<8x128xf32>
      %209 = arith.mulf %200, %166 : vector<8x128xf32>
      %210 = arith.addf %208, %209 : vector<8x128xf32>
      %211 = arith.addi %0, %c3_i32 : i32
      %212 = vector.broadcast %211 : i32 to vector<8x1xi32>
      %213 = arith.cmpi sgt, %21, %212 : vector<8x1xi32>
      %214 = vector.shape_cast %213 : vector<8x1xi1> to vector<8x1xi1>
      %215 = vector.broadcast %214 : vector<8x1xi1> to vector<8x128xi1>
      %216 = arith.select %215, %210, %166 : vector<8x128xi1>, vector<8x128xf32>
      %cst_67 = arith.constant 0.000000e+00 : f32
      %217 = vector.shape_cast %213 : vector<8x1xi1> to vector<8x1xi1>
      %218 = vector.broadcast %217 : vector<8x1xi1> to vector<8x128xi1>
      %219 = vector.broadcast %cst_67 : f32 to vector<8x128xf32>
      %220 = arith.select %218, %216, %219 : vector<8x128xi1>, vector<8x128xf32>
      %221 = arith.index_cast %174 : i32 to index
      %c0_68 = arith.constant 0 : index
      %222 = vector.load %arg8[%221, %c0_68] : memref<64x128xf32, #tpu.memory_space<vmem>>, vector<8x128xf32>
      tpu.vector_store %arg8[%221, %c0_68], %220 {strides = array<i32>} : memref<64x128xf32, #tpu.memory_space<vmem>>, vector<8x128xf32>,
      %c4_i32 = arith.constant 4 : i32
      %c8_i32_69 = arith.constant 8 : i32
      %223 = arith.muli %c4_i32, %c8_i32_69 : i32
      %224 = tpu.assume_multiple %223, 8 : i32
      %225 = arith.index_cast %224 : i32 to index
      %c0_70 = arith.constant 0 : index
      %226 = vector.load %arg10[%225, %c0_70] : memref<64x384xf32, #tpu.memory_space<vmem>>, vector<8x384xf32>
      %227 = arith.truncf %216 : vector<8x128xf32> to vector<8x128xbf16>
      %cst_71 = arith.constant dense<0.000000e+00> : vector<8x384xf32>
      %228 = tpu.matmul %227, %19, %cst_71 {dimension_numbers = #tpu.dot_dimension_numbers<[1], [0], [0], [1], [0, 0, 1, 1], [], []>} : vector<8x128xbf16>, vector<128x384xbf16>, vector<8x384xf32> -> vector<8x384xf32>
      %229 = vector.broadcast %20 : vector<1x384xf32> to vector<8x384xf32>
      %230 = arith.addf %228, %229 : vector<8x384xf32>
      %231 = vector.extract_strided_slice %226 {offsets = [0, 0], sizes = [8, 128], strides = [1, 1]} : vector<8x384xf32> to vector<8x128xf32>
      %232 = vector.extract_strided_slice %230 {offsets = [0, 0], sizes = [8, 128], strides = [1, 1]} : vector<8x384xf32> to vector<8x128xf32>
      %233 = arith.addf %231, %232 : vector<8x128xf32>
      %cst_72 = arith.constant 0.000000e+00 : f32
      %234 = vector.broadcast %cst_72 : f32 to vector<8x128xf32>
      %235 = arith.subf %234, %233 : vector<8x128xf32>
      %236 = math.exp %235 : vector<8x128xf32>
      %cst_73 = arith.constant 1.000000e+00 : f32
      %237 = vector.broadcast %cst_73 : f32 to vector<8x128xf32>
      %238 = arith.addf %237, %236 : vector<8x128xf32>
      %cst_74 = arith.constant 1.000000e+00 : f32
      %239 = vector.broadcast %cst_74 : f32 to vector<8x128xf32>
      %240 = arith.divf %239, %238 : vector<8x128xf32>
      %241 = vector.extract_strided_slice %226 {offsets = [0, 128], sizes = [8, 128], strides = [1, 1]} : vector<8x384xf32> to vector<8x128xf32>
      %242 = vector.extract_strided_slice %230 {offsets = [0, 128], sizes = [8, 128], strides = [1, 1]} : vector<8x384xf32> to vector<8x128xf32>
      %243 = arith.addf %241, %242 : vector<8x128xf32>
      %cst_75 = arith.constant 0.000000e+00 : f32
      %244 = vector.broadcast %cst_75 : f32 to vector<8x128xf32>
      %245 = arith.subf %244, %243 : vector<8x128xf32>
      %246 = math.exp %245 : vector<8x128xf32>
      %cst_76 = arith.constant 1.000000e+00 : f32
      %247 = vector.broadcast %cst_76 : f32 to vector<8x128xf32>
      %248 = arith.addf %247, %246 : vector<8x128xf32>
      %cst_77 = arith.constant 1.000000e+00 : f32
      %249 = vector.broadcast %cst_77 : f32 to vector<8x128xf32>
      %250 = arith.divf %249, %248 : vector<8x128xf32>
      %251 = vector.extract_strided_slice %226 {offsets = [0, 256], sizes = [8, 128], strides = [1, 1]} : vector<8x384xf32> to vector<8x128xf32>
      %252 = vector.extract_strided_slice %230 {offsets = [0, 256], sizes = [8, 128], strides = [1, 1]} : vector<8x384xf32> to vector<8x128xf32>
      %253 = arith.mulf %240, %252 : vector<8x128xf32>
      %254 = arith.addf %251, %253 : vector<8x128xf32>
      %255 = math.tanh %254 : vector<8x128xf32>
      %cst_78 = arith.constant 1.000000e+00 : f32
      %256 = vector.broadcast %cst_78 : f32 to vector<8x128xf32>
      %257 = arith.subf %256, %250 : vector<8x128xf32>
      %258 = arith.mulf %257, %255 : vector<8x128xf32>
      %259 = arith.mulf %250, %216 : vector<8x128xf32>
      %260 = arith.addf %258, %259 : vector<8x128xf32>
      %261 = arith.addi %0, %c4_i32 : i32
      %262 = vector.broadcast %261 : i32 to vector<8x1xi32>
      %263 = arith.cmpi sgt, %21, %262 : vector<8x1xi32>
      %264 = vector.shape_cast %263 : vector<8x1xi1> to vector<8x1xi1>
      %265 = vector.broadcast %264 : vector<8x1xi1> to vector<8x128xi1>
      %266 = arith.select %265, %260, %216 : vector<8x128xi1>, vector<8x128xf32>
      %cst_79 = arith.constant 0.000000e+00 : f32
      %267 = vector.shape_cast %263 : vector<8x1xi1> to vector<8x1xi1>
      %268 = vector.broadcast %267 : vector<8x1xi1> to vector<8x128xi1>
      %269 = vector.broadcast %cst_79 : f32 to vector<8x128xf32>
      %270 = arith.select %268, %266, %269 : vector<8x128xi1>, vector<8x128xf32>
      %271 = arith.index_cast %224 : i32 to index
      %c0_80 = arith.constant 0 : index
      %272 = vector.load %arg8[%271, %c0_80] : memref<64x128xf32, #tpu.memory_space<vmem>>, vector<8x128xf32>
      tpu.vector_store %arg8[%271, %c0_80], %270 {strides = array<i32>} : memref<64x128xf32, #tpu.memory_space<vmem>>, vector<8x128xf32>,
      %c5_i32 = arith.constant 5 : i32
      %c8_i32_81 = arith.constant 8 : i32
      %273 = arith.muli %c5_i32, %c8_i32_81 : i32
      %274 = tpu.assume_multiple %273, 8 : i32
      %275 = arith.index_cast %274 : i32 to index
      %c0_82 = arith.constant 0 : index
      %276 = vector.load %arg10[%275, %c0_82] : memref<64x384xf32, #tpu.memory_space<vmem>>, vector<8x384xf32>
      %277 = arith.truncf %266 : vector<8x128xf32> to vector<8x128xbf16>
      %cst_83 = arith.constant dense<0.000000e+00> : vector<8x384xf32>
      %278 = tpu.matmul %277, %19, %cst_83 {dimension_numbers = #tpu.dot_dimension_numbers<[1], [0], [0], [1], [0, 0, 1, 1], [], []>} : vector<8x128xbf16>, vector<128x384xbf16>, vector<8x384xf32> -> vector<8x384xf32>
      %279 = vector.broadcast %20 : vector<1x384xf32> to vector<8x384xf32>
      %280 = arith.addf %278, %279 : vector<8x384xf32>
      %281 = vector.extract_strided_slice %276 {offsets = [0, 0], sizes = [8, 128], strides = [1, 1]} : vector<8x384xf32> to vector<8x128xf32>
      %282 = vector.extract_strided_slice %280 {offsets = [0, 0], sizes = [8, 128], strides = [1, 1]} : vector<8x384xf32> to vector<8x128xf32>
      %283 = arith.addf %281, %282 : vector<8x128xf32>
      %cst_84 = arith.constant 0.000000e+00 : f32
      %284 = vector.broadcast %cst_84 : f32 to vector<8x128xf32>
      %285 = arith.subf %284, %283 : vector<8x128xf32>
      %286 = math.exp %285 : vector<8x128xf32>
      %cst_85 = arith.constant 1.000000e+00 : f32
      %287 = vector.broadcast %cst_85 : f32 to vector<8x128xf32>
      %288 = arith.addf %287, %286 : vector<8x128xf32>
      %cst_86 = arith.constant 1.000000e+00 : f32
      %289 = vector.broadcast %cst_86 : f32 to vector<8x128xf32>
      %290 = arith.divf %289, %288 : vector<8x128xf32>
      %291 = vector.extract_strided_slice %276 {offsets = [0, 128], sizes = [8, 128], strides = [1, 1]} : vector<8x384xf32> to vector<8x128xf32>
      %292 = vector.extract_strided_slice %280 {offsets = [0, 128], sizes = [8, 128], strides = [1, 1]} : vector<8x384xf32> to vector<8x128xf32>
      %293 = arith.addf %291, %292 : vector<8x128xf32>
      %cst_87 = arith.constant 0.000000e+00 : f32
      %294 = vector.broadcast %cst_87 : f32 to vector<8x128xf32>
      %295 = arith.subf %294, %293 : vector<8x128xf32>
      %296 = math.exp %295 : vector<8x128xf32>
      %cst_88 = arith.constant 1.000000e+00 : f32
      %297 = vector.broadcast %cst_88 : f32 to vector<8x128xf32>
      %298 = arith.addf %297, %296 : vector<8x128xf32>
      %cst_89 = arith.constant 1.000000e+00 : f32
      %299 = vector.broadcast %cst_89 : f32 to vector<8x128xf32>
      %300 = arith.divf %299, %298 : vector<8x128xf32>
      %301 = vector.extract_strided_slice %276 {offsets = [0, 256], sizes = [8, 128], strides = [1, 1]} : vector<8x384xf32> to vector<8x128xf32>
      %302 = vector.extract_strided_slice %280 {offsets = [0, 256], sizes = [8, 128], strides = [1, 1]} : vector<8x384xf32> to vector<8x128xf32>
      %303 = arith.mulf %290, %302 : vector<8x128xf32>
      %304 = arith.addf %301, %303 : vector<8x128xf32>
      %305 = math.tanh %304 : vector<8x128xf32>
      %cst_90 = arith.constant 1.000000e+00 : f32
      %306 = vector.broadcast %cst_90 : f32 to vector<8x128xf32>
      %307 = arith.subf %306, %300 : vector<8x128xf32>
      %308 = arith.mulf %307, %305 : vector<8x128xf32>
      %309 = arith.mulf %300, %266 : vector<8x128xf32>
      %310 = arith.addf %308, %309 : vector<8x128xf32>
      %311 = arith.addi %0, %c5_i32 : i32
      %312 = vector.broadcast %311 : i32 to vector<8x1xi32>
      %313 = arith.cmpi sgt, %21, %312 : vector<8x1xi32>
      %314 = vector.shape_cast %313 : vector<8x1xi1> to vector<8x1xi1>
      %315 = vector.broadcast %314 : vector<8x1xi1> to vector<8x128xi1>
      %316 = arith.select %315, %310, %266 : vector<8x128xi1>, vector<8x128xf32>
      %cst_91 = arith.constant 0.000000e+00 : f32
      %317 = vector.shape_cast %313 : vector<8x1xi1> to vector<8x1xi1>
      %318 = vector.broadcast %317 : vector<8x1xi1> to vector<8x128xi1>
      %319 = vector.broadcast %cst_91 : f32 to vector<8x128xf32>
      %320 = arith.select %318, %316, %319 : vector<8x128xi1>, vector<8x128xf32>
      %321 = arith.index_cast %274 : i32 to index
      %c0_92 = arith.constant 0 : index
      %322 = vector.load %arg8[%321, %c0_92] : memref<64x128xf32, #tpu.memory_space<vmem>>, vector<8x128xf32>
      tpu.vector_store %arg8[%321, %c0_92], %320 {strides = array<i32>} : memref<64x128xf32, #tpu.memory_space<vmem>>, vector<8x128xf32>,
      %c6_i32 = arith.constant 6 : i32
      %c8_i32_93 = arith.constant 8 : i32
      %323 = arith.muli %c6_i32, %c8_i32_93 : i32
      %324 = tpu.assume_multiple %323, 8 : i32
      %325 = arith.index_cast %324 : i32 to index
      %c0_94 = arith.constant 0 : index
      %326 = vector.load %arg10[%325, %c0_94] : memref<64x384xf32, #tpu.memory_space<vmem>>, vector<8x384xf32>
      %327 = arith.truncf %316 : vector<8x128xf32> to vector<8x128xbf16>
      %cst_95 = arith.constant dense<0.000000e+00> : vector<8x384xf32>
      %328 = tpu.matmul %327, %19, %cst_95 {dimension_numbers = #tpu.dot_dimension_numbers<[1], [0], [0], [1], [0, 0, 1, 1], [], []>} : vector<8x128xbf16>, vector<128x384xbf16>, vector<8x384xf32> -> vector<8x384xf32>
      %329 = vector.broadcast %20 : vector<1x384xf32> to vector<8x384xf32>
      %330 = arith.addf %328, %329 : vector<8x384xf32>
      %331 = vector.extract_strided_slice %326 {offsets = [0, 0], sizes = [8, 128], strides = [1, 1]} : vector<8x384xf32> to vector<8x128xf32>
      %332 = vector.extract_strided_slice %330 {offsets = [0, 0], sizes = [8, 128], strides = [1, 1]} : vector<8x384xf32> to vector<8x128xf32>
      %333 = arith.addf %331, %332 : vector<8x128xf32>
      %cst_96 = arith.constant 0.000000e+00 : f32
      %334 = vector.broadcast %cst_96 : f32 to vector<8x128xf32>
      %335 = arith.subf %334, %333 : vector<8x128xf32>
      %336 = math.exp %335 : vector<8x128xf32>
      %cst_97 = arith.constant 1.000000e+00 : f32
      %337 = vector.broadcast %cst_97 : f32 to vector<8x128xf32>
      %338 = arith.addf %337, %336 : vector<8x128xf32>
      %cst_98 = arith.constant 1.000000e+00 : f32
      %339 = vector.broadcast %cst_98 : f32 to vector<8x128xf32>
      %340 = arith.divf %339, %338 : vector<8x128xf32>
      %341 = vector.extract_strided_slice %326 {offsets = [0, 128], sizes = [8, 128], strides = [1, 1]} : vector<8x384xf32> to vector<8x128xf32>
      %342 = vector.extract_strided_slice %330 {offsets = [0, 128], sizes = [8, 128], strides = [1, 1]} : vector<8x384xf32> to vector<8x128xf32>
      %343 = arith.addf %341, %342 : vector<8x128xf32>
      %cst_99 = arith.constant 0.000000e+00 : f32
      %344 = vector.broadcast %cst_99 : f32 to vector<8x128xf32>
      %345 = arith.subf %344, %343 : vector<8x128xf32>
      %346 = math.exp %345 : vector<8x128xf32>
      %cst_100 = arith.constant 1.000000e+00 : f32
      %347 = vector.broadcast %cst_100 : f32 to vector<8x128xf32>
      %348 = arith.addf %347, %346 : vector<8x128xf32>
      %cst_101 = arith.constant 1.000000e+00 : f32
      %349 = vector.broadcast %cst_101 : f32 to vector<8x128xf32>
      %350 = arith.divf %349, %348 : vector<8x128xf32>
      %351 = vector.extract_strided_slice %326 {offsets = [0, 256], sizes = [8, 128], strides = [1, 1]} : vector<8x384xf32> to vector<8x128xf32>
      %352 = vector.extract_strided_slice %330 {offsets = [0, 256], sizes = [8, 128], strides = [1, 1]} : vector<8x384xf32> to vector<8x128xf32>
      %353 = arith.mulf %340, %352 : vector<8x128xf32>
      %354 = arith.addf %351, %353 : vector<8x128xf32>
      %355 = math.tanh %354 : vector<8x128xf32>
      %cst_102 = arith.constant 1.000000e+00 : f32
      %356 = vector.broadcast %cst_102 : f32 to vector<8x128xf32>
      %357 = arith.subf %356, %350 : vector<8x128xf32>
      %358 = arith.mulf %357, %355 : vector<8x128xf32>
      %359 = arith.mulf %350, %316 : vector<8x128xf32>
      %360 = arith.addf %358, %359 : vector<8x128xf32>
      %361 = arith.addi %0, %c6_i32 : i32
      %362 = vector.broadcast %361 : i32 to vector<8x1xi32>
      %363 = arith.cmpi sgt, %21, %362 : vector<8x1xi32>
      %364 = vector.shape_cast %363 : vector<8x1xi1> to vector<8x1xi1>
      %365 = vector.broadcast %364 : vector<8x1xi1> to vector<8x128xi1>
      %366 = arith.select %365, %360, %316 : vector<8x128xi1>, vector<8x128xf32>
      %cst_103 = arith.constant 0.000000e+00 : f32
      %367 = vector.shape_cast %363 : vector<8x1xi1> to vector<8x1xi1>
      %368 = vector.broadcast %367 : vector<8x1xi1> to vector<8x128xi1>
      %369 = vector.broadcast %cst_103 : f32 to vector<8x128xf32>
      %370 = arith.select %368, %366, %369 : vector<8x128xi1>, vector<8x128xf32>
      %371 = arith.index_cast %324 : i32 to index
      %c0_104 = arith.constant 0 : index
      %372 = vector.load %arg8[%371, %c0_104] : memref<64x128xf32, #tpu.memory_space<vmem>>, vector<8x128xf32>
      tpu.vector_store %arg8[%371, %c0_104], %370 {strides = array<i32>} : memref<64x128xf32, #tpu.memory_space<vmem>>, vector<8x128xf32>,
      %c7_i32 = arith.constant 7 : i32
      %c8_i32_105 = arith.constant 8 : i32
      %373 = arith.muli %c7_i32, %c8_i32_105 : i32
      %374 = tpu.assume_multiple %373, 8 : i32
      %375 = arith.index_cast %374 : i32 to index
      %c0_106 = arith.constant 0 : index
      %376 = vector.load %arg10[%375, %c0_106] : memref<64x384xf32, #tpu.memory_space<vmem>>, vector<8x384xf32>
      %377 = arith.truncf %366 : vector<8x128xf32> to vector<8x128xbf16>
      %cst_107 = arith.constant dense<0.000000e+00> : vector<8x384xf32>
      %378 = tpu.matmul %377, %19, %cst_107 {dimension_numbers = #tpu.dot_dimension_numbers<[1], [0], [0], [1], [0, 0, 1, 1], [], []>} : vector<8x128xbf16>, vector<128x384xbf16>, vector<8x384xf32> -> vector<8x384xf32>
      %379 = vector.broadcast %20 : vector<1x384xf32> to vector<8x384xf32>
      %380 = arith.addf %378, %379 : vector<8x384xf32>
      %381 = vector.extract_strided_slice %376 {offsets = [0, 0], sizes = [8, 128], strides = [1, 1]} : vector<8x384xf32> to vector<8x128xf32>
      %382 = vector.extract_strided_slice %380 {offsets = [0, 0], sizes = [8, 128], strides = [1, 1]} : vector<8x384xf32> to vector<8x128xf32>
      %383 = arith.addf %381, %382 : vector<8x128xf32>
      %cst_108 = arith.constant 0.000000e+00 : f32
      %384 = vector.broadcast %cst_108 : f32 to vector<8x128xf32>
      %385 = arith.subf %384, %383 : vector<8x128xf32>
      %386 = math.exp %385 : vector<8x128xf32>
      %cst_109 = arith.constant 1.000000e+00 : f32
      %387 = vector.broadcast %cst_109 : f32 to vector<8x128xf32>
      %388 = arith.addf %387, %386 : vector<8x128xf32>
      %cst_110 = arith.constant 1.000000e+00 : f32
      %389 = vector.broadcast %cst_110 : f32 to vector<8x128xf32>
      %390 = arith.divf %389, %388 : vector<8x128xf32>
      %391 = vector.extract_strided_slice %376 {offsets = [0, 128], sizes = [8, 128], strides = [1, 1]} : vector<8x384xf32> to vector<8x128xf32>
      %392 = vector.extract_strided_slice %380 {offsets = [0, 128], sizes = [8, 128], strides = [1, 1]} : vector<8x384xf32> to vector<8x128xf32>
      %393 = arith.addf %391, %392 : vector<8x128xf32>
      %cst_111 = arith.constant 0.000000e+00 : f32
      %394 = vector.broadcast %cst_111 : f32 to vector<8x128xf32>
      %395 = arith.subf %394, %393 : vector<8x128xf32>
      %396 = math.exp %395 : vector<8x128xf32>
      %cst_112 = arith.constant 1.000000e+00 : f32
      %397 = vector.broadcast %cst_112 : f32 to vector<8x128xf32>
      %398 = arith.addf %397, %396 : vector<8x128xf32>
      %cst_113 = arith.constant 1.000000e+00 : f32
      %399 = vector.broadcast %cst_113 : f32 to vector<8x128xf32>
      %400 = arith.divf %399, %398 : vector<8x128xf32>
      %401 = vector.extract_strided_slice %376 {offsets = [0, 256], sizes = [8, 128], strides = [1, 1]} : vector<8x384xf32> to vector<8x128xf32>
      %402 = vector.extract_strided_slice %380 {offsets = [0, 256], sizes = [8, 128], strides = [1, 1]} : vector<8x384xf32> to vector<8x128xf32>
      %403 = arith.mulf %390, %402 : vector<8x128xf32>
      %404 = arith.addf %401, %403 : vector<8x128xf32>
      %405 = math.tanh %404 : vector<8x128xf32>
      %cst_114 = arith.constant 1.000000e+00 : f32
      %406 = vector.broadcast %cst_114 : f32 to vector<8x128xf32>
      %407 = arith.subf %406, %400 : vector<8x128xf32>
      %408 = arith.mulf %407, %405 : vector<8x128xf32>
      %409 = arith.mulf %400, %366 : vector<8x128xf32>
      %410 = arith.addf %408, %409 : vector<8x128xf32>
      %411 = arith.addi %0, %c7_i32 : i32
      %412 = vector.broadcast %411 : i32 to vector<8x1xi32>
      %413 = arith.cmpi sgt, %21, %412 : vector<8x1xi32>
      %414 = vector.shape_cast %413 : vector<8x1xi1> to vector<8x1xi1>
      %415 = vector.broadcast %414 : vector<8x1xi1> to vector<8x128xi1>
      %416 = arith.select %415, %410, %366 : vector<8x128xi1>, vector<8x128xf32>
      %cst_115 = arith.constant 0.000000e+00 : f32
      %417 = vector.shape_cast %413 : vector<8x1xi1> to vector<8x1xi1>
      %418 = vector.broadcast %417 : vector<8x1xi1> to vector<8x128xi1>
      %419 = vector.broadcast %cst_115 : f32 to vector<8x128xf32>
      %420 = arith.select %418, %416, %419 : vector<8x128xi1>, vector<8x128xf32>
      %421 = arith.index_cast %374 : i32 to index
      %c0_116 = arith.constant 0 : index
      %422 = vector.load %arg8[%421, %c0_116] : memref<64x128xf32, #tpu.memory_space<vmem>>, vector<8x128xf32>
      tpu.vector_store %arg8[%421, %c0_116], %420 {strides = array<i32>} : memref<64x128xf32, #tpu.memory_space<vmem>>, vector<8x128xf32>,
      %c8_i32_117 = arith.constant 8 : i32
      %c0_118 = arith.constant 0 : index
      %c0_119 = arith.constant 0 : index
      %423 = vector.load %arg9[%c0_118, %c0_119] : memref<8x128xf32, #tpu.memory_space<vmem>>, vector<8x128xf32>
      tpu.vector_store %arg9[%c0_118, %c0_119], %416 {strides = array<i32>} : memref<8x128xf32, #tpu.memory_space<vmem>>, vector<8x128xf32>,
    } else {
    }
    %c0_2 = arith.constant 0 : index
    %8 = memref.load %arg1[%c0_2] : memref<1xi32, #tpu.memory_space<smem>>
    %9 = arith.cmpi sge, %0, %8 : i32
    %10 = arith.extui %9 : i1 to i32
    %c0_i32_3 = arith.constant 0 : i32
    %11 = arith.cmpi ne, %10, %c0_i32_3 : i32
    scf.if %11 {
      %cst = arith.constant 0.000000e+00 : f32
      %12 = vector.broadcast %cst : f32 to vector<64x128xf32>
      %c0_4 = arith.constant 0 : index
      %c0_5 = arith.constant 0 : index
      %13 = vector.load %arg8[%c0_4, %c0_5] : memref<64x128xf32, #tpu.memory_space<vmem>>, vector<64x128xf32>
      tpu.vector_store %arg8[%c0_4, %c0_5], %12 {strides = array<i32>} : memref<64x128xf32, #tpu.memory_space<vmem>>, vector<64x128xf32>,
    } else {
    }
    return
  }
  func.func @transform_0(%arg0: i32, %arg1: memref<1xi32, #tpu.memory_space<smem>>) -> (i32, i32) {
    %c0_i32 = arith.constant 0 : i32
    %c0_i32_0 = arith.constant 0 : i32
    %c0_i32_1 = arith.constant 0 : i32
    return %c0_i32, %c0_i32_0 : i32, i32
  }
  func.func @transform_1(%arg0: i32, %arg1: memref<1xi32, #tpu.memory_space<smem>>) -> (i32, i32) {
    %c0_i32 = arith.constant 0 : i32
    %c0_i32_0 = arith.constant 0 : i32
    return %arg0, %c0_i32 : i32, i32
  }
  func.func @transform_2(%arg0: i32, %arg1: memref<1xi32, #tpu.memory_space<smem>>) -> (i32, i32) {
    %c0_i32 = arith.constant 0 : i32
    %c0_i32_0 = arith.constant 0 : i32
    %c0_i32_1 = arith.constant 0 : i32
    return %c0_i32, %c0_i32_0 : i32, i32
  }
  func.func @transform_3(%arg0: i32, %arg1: memref<1xi32, #tpu.memory_space<smem>>) -> (i32, i32) {
    %c0_i32 = arith.constant 0 : i32
    %c0_i32_0 = arith.constant 0 : i32
    %c0_i32_1 = arith.constant 0 : i32
    return %c0_i32, %c0_i32_0 : i32, i32
  }
  func.func @transform_4(%arg0: i32, %arg1: memref<1xi32, #tpu.memory_space<smem>>) -> (i32, i32) {
    %c0_i32 = arith.constant 0 : i32
    %c0_i32_0 = arith.constant 0 : i32
    %c0_i32_1 = arith.constant 0 : i32
    return %c0_i32, %c0_i32_0 : i32, i32
  }
  func.func @transform_5(%arg0: i32, %arg1: memref<1xi32, #tpu.memory_space<smem>>) -> (i32, i32) {
    %c0_i32 = arith.constant 0 : i32
    %c0_i32_0 = arith.constant 0 : i32
    %c0_i32_1 = arith.constant 0 : i32
    return %c0_i32, %c0_i32_0 : i32, i32
  }
  func.func @transform_6(%arg0: i32, %arg1: memref<1xi32, #tpu.memory_space<smem>>) -> (i32, i32) {
    %c0_i32 = arith.constant 0 : i32
    %c0_i32_0 = arith.constant 0 : i32
    return %arg0, %c0_i32 : i32, i32
  }
}

</mosaic_0001>

<llo_original>
// kernel: state_transition_forward.2
$region0: #{state_transition_forward.2}
  #allocation0 [shape = 'u32[]', space=smem, size = 0x4, offset = 0x4, fixed_abs, tag = 'smem constant byte address 0x4 - core index']
  #allocation1 [shape = 'u32[72,128]{1,0:T(1,128)}', space=vmem, size = 0x9000, scoped, tag = 'internal scratch']
  #allocation2 [shape = 'f32[8,128]{1,0:T(8,128)}', space=vmem, size = 0x1000, scoped, tag = 'scratch operand']
  #allocation3 [shape = 'f32[64,384]{1,0:T(8,128)}', space=vmem, size = 0x18000, scoped, tag = 'scratch operand']
  #allocation4 [shape = 's32[1]{0}', space=sflag, size = 0x4, scoped, tag = 'scoped memory for state_transition_forward.2']
  #allocation5 [shape = 's32[1]{0:T(128)S(6)}', space=smem, size = 0x200, scoped, tag = 'prefetched SMEM operand 0']
  %s0 = inlined_call_operand.<no memory space> [shape: s32[1], index: 0, kind: input, shape index: {}]
  %s1 = inlined_call_operand.vmem [shape: s32[8,1], index: 1, kind: input, shape index: {}]
  %s2 = inlined_call_operand.vmem [shape: bf16[64,128], index: 2, kind: input, shape index: {}]
  %s3 = inlined_call_operand.vmem [shape: bf16[128,384], index: 3, kind: input, shape index: {}]
  %s4 = inlined_call_operand.vmem [shape: bf16[128,384], index: 4, kind: input, shape index: {}]
  %s5 = inlined_call_operand.vmem [shape: f32[1,384], index: 5, kind: input, shape index: {}]
  %s6 = inlined_call_operand.vmem [shape: f32[1,384], index: 6, kind: input, shape index: {}]
  %s7 = inlined_call_operand.vmem [shape: f32[64,128], index: 7, kind: output, shape index: {}]
  %s8 = sld [smem:[#allocation0]]
  $region46: #{state_transition_forward.2} parent=0
    _
  %s10 = ssub.s32 1, %s8
  %s11 = scalar_select 0, %s10, %s8
  %12 = sst [smem:[#allocation5]] %s0
  // Predicated region
  $region2: #{state_transition_forward.2} parent=0 // pred_check
    _
  $region3: #{state_transition_forward.2} parent=0 // pred_check_branch
    %14 = sbr.rel (0) target = $region5
  $region4: #{state_transition_forward.2} parent=0 // pred_region
    _
  $region5: #{state_transition_forward.2} parent=0 // pred_fallthru
    _
  // Predicated region
  $region6: #{state_transition_forward.2} parent=0 // pred_check
    _
  $region7: #{state_transition_forward.2} parent=0 // pred_check_branch
    %16 = sbr.rel (0) target = $region9
  $region8: #{state_transition_forward.2} parent=0 // pred_region
    _
  $region9: #{state_transition_forward.2} parent=0 // pred_fallthru
    _
  // Predicated region
  $region10: #{state_transition_forward.2} parent=0 // pred_check
    _
  $region11: #{state_transition_forward.2} parent=0 // pred_check_branch
    %18 = sbr.rel (0) target = $region13
  $region12: #{state_transition_forward.2} parent=0 // pred_region
    _
  $region13: #{state_transition_forward.2} parent=0 // pred_fallthru
    _
  // Predicated region
  $region14: #{state_transition_forward.2} parent=0 // pred_check
    _
  $region15: #{state_transition_forward.2} parent=0 // pred_check_branch
    %20 = sbr.rel (0) target = $region17
  $region16: #{state_transition_forward.2} parent=0 // pred_region
    _
  $region17: #{state_transition_forward.2} parent=0 // pred_fallthru
    _
  // Predicated region
  $region18: #{state_transition_forward.2} parent=0 // pred_check
    _
  $region19: #{state_transition_forward.2} parent=0 // pred_check_branch
    %22 = sbr.rel (0) target = $region21
  $region20: #{state_transition_forward.2} parent=0 // pred_region
    _
  $region21: #{state_transition_forward.2} parent=0 // pred_fallthru
    _
  // Predicated region
  $region22: #{state_transition_forward.2} parent=0 // pred_check
    _
  $region23: #{state_transition_forward.2} parent=0 // pred_check_branch
    %24 = sbr.rel (0) target = $region25
  $region24: #{state_transition_forward.2} parent=0 // pred_region
    _
  $region25: #{state_transition_forward.2} parent=0 // pred_fallthru
    _
  %s25 = smul.u32 0, 8
  %p26 = scmp.eq.s32.totalorder 0, 0
  // Predicated region
  $region26: #{state_transition_forward.2} parent=0 // pred_check
    %p27 = pneg %p26
  $region27: #{state_transition_forward.2} parent=0 // pred_check_branch
    %29 = sbr.rel (%p27) target = $region29
  $region28: #{state_transition_forward.2} parent=0 // pred_region
    %30 = vst [vmem:[#allocation2] sm:$0xff] 0.0
  $region29: #{state_transition_forward.2} parent=0 // pred_fallthru
    _
  %s31 = sld [smem:[#allocation5]]
  %p32 = scmp.lt.s32.totalorder %s25, %s31
  // Predicated region
  $region30: #{state_transition_forward.2} parent=0 // pred_check
    %p33 = pneg %p32
  $region31: #{state_transition_forward.2} parent=0 // pred_check_branch
    %35 = sbr.rel (%p33) target = $region33
  $region32: #{state_transition_forward.2} parent=0 // pred_region
    %v36 = vld [vmem:[%s2] sm:$0xf]
    %v37 = vld [vmem:[%s2 + $0x4] sm:$0xf]
    %v38 = vld [vmem:[%s2 + $0x8] sm:$0xf]
    %v39 = vld [vmem:[%s2 + $0xc] sm:$0xf]
    %v40 = vld [vmem:[%s2 + $0x10] sm:$0xf]
    %v41 = vld [vmem:[%s2 + $0x14] sm:$0xf]
    %v42 = vld [vmem:[%s2 + $0x18] sm:$0xf]
    %v43 = vld [vmem:[%s2 + $0x1c] sm:$0xf]
    %v44 = vld [vmem:[%s3] sm:$0xff]
    %v45 = vld [vmem:[%s3 + $0x8] sm:$0xf]
    %v46 = vld [vmem:[%s3 + $0xc] sm:$0xff]
    %v47 = vld [vmem:[%s3 + $0x14] sm:$0xf]
    %v48 = vld [vmem:[%s3 + $0x18] sm:$0xff]
    %v49 = vld [vmem:[%s3 + $0x20] sm:$0xf]
    %v50 = vld [vmem:[%s3 + $0x24] sm:$0xff]
    %v51 = vld [vmem:[%s3 + $0x2c] sm:$0xf]
    %v52 = vld [vmem:[%s3 + $0x30] sm:$0xff]
    %v53 = vld [vmem:[%s3 + $0x38] sm:$0xf]
    %v54 = vld [vmem:[%s3 + $0x3c] sm:$0xff]
    %v55 = vld [vmem:[%s3 + $0x44] sm:$0xf]
    %v56 = vld [vmem:[%s3 + $0x48] sm:$0xff]
    %v57 = vld [vmem:[%s3 + $0x50] sm:$0xf]
    %v58 = vld [vmem:[%s3 + $0x54] sm:$0xff]
    %v59 = vld [vmem:[%s3 + $0x5c] sm:$0xf]
    %v60 = vld [vmem:[%s3 + $0x60] sm:$0xff]
    %v61 = vld [vmem:[%s3 + $0x68] sm:$0xf]
    %v62 = vld [vmem:[%s3 + $0x6c] sm:$0xff]
    %v63 = vld [vmem:[%s3 + $0x74] sm:$0xf]
    %v64 = vld [vmem:[%s3 + $0x78] sm:$0xff]
    %v65 = vld [vmem:[%s3 + $0x80] sm:$0xf]
    %v66 = vld [vmem:[%s3 + $0x84] sm:$0xff]
    %v67 = vld [vmem:[%s3 + $0x8c] sm:$0xf]
    %v68 = vld [vmem:[%s3 + $0x90] sm:$0xff]
    %v69 = vld [vmem:[%s3 + $0x98] sm:$0xf]
    %v70 = vld [vmem:[%s3 + $0x9c] sm:$0xff]
    %v71 = vld [vmem:[%s3 + $0xa4] sm:$0xf]
    %v72 = vld [vmem:[%s3 + $0xa8] sm:$0xff]
    %v73 = vld [vmem:[%s3 + $0xb0] sm:$0xf]
    %v74 = vld [vmem:[%s3 + $0xb4] sm:$0xff]
    %v75 = vld [vmem:[%s3 + $0xbc] sm:$0xf]
    %v76 = vld [vmem:[%s5] sm:$0x7]
    %v78 = vperm.slane %v76, 0
    %v79 = vperm.slane %v76, 1
    %v80 = vperm.slane %v76, 2
    %v92 = vunpack.c.l.b16 %v36
    %v93 = vunpack.c.l.b16 %v37
    %v94 = vunpack.c.l.b16 %v38
    %v95 = vunpack.c.l.b16 %v39
    %v96 = vunpack.c.l.b16 %v40
    %v97 = vunpack.c.l.b16 %v41
    %v98 = vunpack.c.l.b16 %v42
    %v99 = vunpack.c.l.b16 %v43
    %v100 = vpack.c.b16 %v93, %v92
    %v101 = vpack.c.b16 %v95, %v94
    %v102 = vpack.c.b16 %v97, %v96
    %v103 = vpack.c.b16 %v99, %v98
    %v140 = vunpack.c.l.b16 %v44
    %v141 = vunpack.c.h.b16 %v44
    %v142 = vunpack.c.l.b16 %v45
    %v143 = vunpack.c.l.b16 %v46
    %v144 = vunpack.c.h.b16 %v46
    %v145 = vunpack.c.l.b16 %v47
    %v146 = vunpack.c.l.b16 %v48
    %v147 = vunpack.c.h.b16 %v48
    %v148 = vunpack.c.l.b16 %v49
    %v149 = vunpack.c.l.b16 %v50
    %v150 = vunpack.c.h.b16 %v50
    %v151 = vunpack.c.l.b16 %v51
    %v152 = vunpack.c.l.b16 %v52
    %v153 = vunpack.c.h.b16 %v52
    %v154 = vunpack.c.l.b16 %v53
    %v155 = vunpack.c.l.b16 %v54
    %v156 = vunpack.c.h.b16 %v54
    %v157 = vunpack.c.l.b16 %v55
    %v158 = vunpack.c.l.b16 %v56
    %v159 = vunpack.c.h.b16 %v56
    %v160 = vunpack.c.l.b16 %v57
    %v161 = vunpack.c.l.b16 %v58
    %v162 = vunpack.c.h.b16 %v58
    %v163 = vunpack.c.l.b16 %v59
    %v164 = vunpack.c.l.b16 %v60
    %v165 = vunpack.c.h.b16 %v60
    %v166 = vunpack.c.l.b16 %v61
    %v167 = vunpack.c.l.b16 %v62
    %v168 = vunpack.c.h.b16 %v62
    %v169 = vunpack.c.l.b16 %v63
    %v170 = vunpack.c.l.b16 %v64
    %v171 = vunpack.c.h.b16 %v64
    %v172 = vunpack.c.l.b16 %v65
    %v173 = vunpack.c.l.b16 %v66
    %v174 = vunpack.c.h.b16 %v66
    %v175 = vunpack.c.l.b16 %v67
    %v176 = vunpack.c.l.b16 %v68
    %v177 = vunpack.c.h.b16 %v68
    %v178 = vunpack.c.l.b16 %v69
    %v179 = vunpack.c.l.b16 %v70
    %v180 = vunpack.c.h.b16 %v70
    %v181 = vunpack.c.l.b16 %v71
    %v182 = vunpack.c.l.b16 %v72
    %v183 = vunpack.c.h.b16 %v72
    %v184 = vunpack.c.l.b16 %v73
    %v185 = vunpack.c.l.b16 %v74
    %v186 = vunpack.c.h.b16 %v74
    %v187 = vunpack.c.l.b16 %v75
    %v188 = vpack.c.b16 %v143, %v140
    %v189 = vpack.c.b16 %v144, %v141
    %v190 = vpack.c.b16 %v145, %v142
    %v191 = vpack.c.b16 %v149, %v146
    %v192 = vpack.c.b16 %v150, %v147
    %v193 = vpack.c.b16 %v151, %v148
    %v194 = vpack.c.b16 %v155, %v152
    %v195 = vpack.c.b16 %v156, %v153
    %v196 = vpack.c.b16 %v157, %v154
    %v197 = vpack.c.b16 %v161, %v158
    %v198 = vpack.c.b16 %v162, %v159
    %v199 = vpack.c.b16 %v163, %v160
    %v200 = vpack.c.b16 %v167, %v164
    %v201 = vpack.c.b16 %v168, %v165
    %v202 = vpack.c.b16 %v169, %v166
    %v203 = vpack.c.b16 %v173, %v170
    %v204 = vpack.c.b16 %v174, %v171
    %v205 = vpack.c.b16 %v175, %v172
    %v206 = vpack.c.b16 %v179, %v176
    %v207 = vpack.c.b16 %v180, %v177
    %v208 = vpack.c.b16 %v181, %v178
    %v209 = vpack.c.b16 %v185, %v182
    %v210 = vpack.c.b16 %v186, %v183
    %v211 = vpack.c.b16 %v187, %v184
    %236 = vmatpush.bf16.msra.mxu0 %v209
    %237 = vmatpush.bf16.msra.mxu0 %v206
    %238 = vmatpush.bf16.msra.mxu0 %v203
    %239 = vmatpush.bf16.msra.mxu0 %v200
    %240 = vmatpush.bf16.msra.mxu0 %v197
    %241 = vmatpush.bf16.msra.mxu0 %v194
    %242 = vmatpush.bf16.msra.mxu0 %v191
    %243 = vmatpush.bf16.msra.mxu0 %v188
    %244 = vmatmul.bf16.gmra.mxu0 %v100
    %v245 = vpop.f32.mrf.mxu0
    %v246 = vadd.f32 %v78, %v245
    %v247 = vpop.f32.mrf.mxu0
    %v248 = vadd.f32 %v78, %v247
    %249 = vmatmul.bf16.gmra.mxu0 %v101
    %v250 = vpop.f32.mrf.mxu0
    %v251 = vadd.f32 %v78, %v250
    %v252 = vpop.f32.mrf.mxu0
    %v253 = vadd.f32 %v78, %v252
    %254 = vmatmul.bf16.gmra.mxu0 %v102
    %v255 = vpop.f32.mrf.mxu0
    %v256 = vadd.f32 %v78, %v255
    %v257 = vpop.f32.mrf.mxu0
    %v258 = vadd.f32 %v78, %v257
    %259 = vmatmul.bf16.gmra.mxu0 %v103
    %v260 = vpop.f32.mrf.mxu0
    %v261 = vadd.f32 %v78, %v260
    %v262 = vpop.f32.mrf.mxu0
    %v263 = vadd.f32 %v78, %v262
    %264 = vdwg.mxu0
    %265 = vmatpush.bf16.msra.mxu0 %v210
    %266 = vmatpush.bf16.msra.mxu0 %v207
    %267 = vmatpush.bf16.msra.mxu0 %v204
    %268 = vmatpush.bf16.msra.mxu0 %v201
    %269 = vmatpush.bf16.msra.mxu0 %v198
    %270 = vmatpush.bf16.msra.mxu0 %v195
    %271 = vmatpush.bf16.msra.mxu0 %v192
    %272 = vmatpush.bf16.msra.mxu0 %v189
    %273 = vmatmul.bf16.gmra.mxu0 %v100
    %v274 = vpop.f32.mrf.mxu0
    %v275 = vadd.f32 %v79, %v274
    %v276 = vpop.f32.mrf.mxu0
    %v277 = vadd.f32 %v79, %v276
    %278 = vmatmul.bf16.gmra.mxu0 %v101
    %v279 = vpop.f32.mrf.mxu0
    %v280 = vadd.f32 %v79, %v279
    %v281 = vpop.f32.mrf.mxu0
    %v282 = vadd.f32 %v79, %v281
    %283 = vmatmul.bf16.gmra.mxu0 %v102
    %v284 = vpop.f32.mrf.mxu0
    %v285 = vadd.f32 %v79, %v284
    %v286 = vpop.f32.mrf.mxu0
    %v287 = vadd.f32 %v79, %v286
    %288 = vmatmul.bf16.gmra.mxu0 %v103
    %v289 = vpop.f32.mrf.mxu0
    %v290 = vadd.f32 %v79, %v289
    %v291 = vpop.f32.mrf.mxu0
    %v292 = vadd.f32 %v79, %v291
    %293 = vdwg.mxu0
    %294 = vmatpush.bf16.msra.mxu0 %v211
    %295 = vmatpush.bf16.msra.mxu0 %v208
    %296 = vmatpush.bf16.msra.mxu0 %v205
    %297 = vmatpush.bf16.msra.mxu0 %v202
    %298 = vmatpush.bf16.msra.mxu0 %v199
    %299 = vmatpush.bf16.msra.mxu0 %v196
    %300 = vmatpush.bf16.msra.mxu0 %v193
    %301 = vmatpush.bf16.msra.mxu0 %v190
    %302 = vmatmul.bf16.gmra.mxu0 %v100
    %v303 = vpop.f32.mrf.mxu0
    %v304 = vadd.f32 %v80, %v303
    %v305 = vpop.f32.mrf.mxu0
    %v306 = vadd.f32 %v80, %v305
    %307 = vmatmul.bf16.gmra.mxu0 %v101
    %v308 = vpop.f32.mrf.mxu0
    %v309 = vadd.f32 %v80, %v308
    %v310 = vpop.f32.mrf.mxu0
    %v311 = vadd.f32 %v80, %v310
    %312 = vmatmul.bf16.gmra.mxu0 %v102
    %v313 = vpop.f32.mrf.mxu0
    %v314 = vadd.f32 %v80, %v313
    %v315 = vpop.f32.mrf.mxu0
    %v316 = vadd.f32 %v80, %v315
    %317 = vmatmul.bf16.gmra.mxu0 %v103
    %v318 = vpop.f32.mrf.mxu0
    %v319 = vadd.f32 %v80, %v318
    %v320 = vpop.f32.mrf.mxu0
    %v321 = vadd.f32 %v80, %v320
    %322 = vdwg.mxu0
    %323 = vst [vmem:[#allocation3] sm:$0xff] %v246
    %324 = vst [vmem:[#allocation3 + $0x8] sm:$0xff] %v275
    %325 = vst [vmem:[#allocation3 + $0x10] sm:$0xff] %v304
    %326 = vst [vmem:[#allocation3 + $0x18] sm:$0xff] %v248
    %327 = vst [vmem:[#allocation3 + $0x20] sm:$0xff] %v277
    %328 = vst [vmem:[#allocation3 + $0x28] sm:$0xff] %v306
    %329 = vst [vmem:[#allocation3 + $0x30] sm:$0xff] %v251
    %330 = vst [vmem:[#allocation3 + $0x38] sm:$0xff] %v280
    %331 = vst [vmem:[#allocation3 + $0x40] sm:$0xff] %v309
    %332 = vst [vmem:[#allocation3 + $0x48] sm:$0xff] %v253
    %333 = vst [vmem:[#allocation3 + $0x50] sm:$0xff] %v282
    %334 = vst [vmem:[#allocation3 + $0x58] sm:$0xff] %v311
    %335 = vst [vmem:[#allocation3 + $0x60] sm:$0xff] %v256
    %336 = vst [vmem:[#allocation3 + $0x68] sm:$0xff] %v285
    %337 = vst [vmem:[#allocation3 + $0x70] sm:$0xff] %v314
    %338 = vst [vmem:[#allocation3 + $0x78] sm:$0xff] %v258
    %339 = vst [vmem:[#allocation3 + $0x80] sm:$0xff] %v287
    %340 = vst [vmem:[#allocation3 + $0x88] sm:$0xff] %v316
    %341 = vst [vmem:[#allocation3 + $0x90] sm:$0xff] %v261
    %342 = vst [vmem:[#allocation3 + $0x98] sm:$0xff] %v290
    %343 = vst [vmem:[#allocation3 + $0xa0] sm:$0xff] %v319
    %344 = vst [vmem:[#allocation3 + $0xa8] sm:$0xff] %v263
    %345 = vst [vmem:[#allocation3 + $0xb0] sm:$0xff] %v292
    %346 = vst [vmem:[#allocation3 + $0xb8] sm:$0xff] %v321
    %v347 = vld [vmem:[%s4] sm:$0xff]
    %v348 = vld [vmem:[%s4 + $0x8] sm:$0xf]
    %v349 = vld [vmem:[%s4 + $0xc] sm:$0xff]
    %v350 = vld [vmem:[%s4 + $0x14] sm:$0xf]
    %v351 = vld [vmem:[%s4 + $0x18] sm:$0xff]
    %v352 = vld [vmem:[%s4 + $0x20] sm:$0xf]
    %v353 = vld [vmem:[%s4 + $0x24] sm:$0xff]
    %v354 = vld [vmem:[%s4 + $0x2c] sm:$0xf]
    %v355 = vld [vmem:[%s4 + $0x30] sm:$0xff]
    %v356 = vld [vmem:[%s4 + $0x38] sm:$0xf]
    %v357 = vld [vmem:[%s4 + $0x3c] sm:$0xff]
    %v358 = vld [vmem:[%s4 + $0x44] sm:$0xf]
    %v359 = vld [vmem:[%s4 + $0x48] sm:$0xff]
    %v360 = vld [vmem:[%s4 + $0x50] sm:$0xf]
    %v361 = vld [vmem:[%s4 + $0x54] sm:$0xff]
    %v362 = vld [vmem:[%s4 + $0x5c] sm:$0xf]
    %v363 = vld [vmem:[%s4 + $0x60] sm:$0xff]
    %v364 = vld [vmem:[%s4 + $0x68] sm:$0xf]
    %v365 = vld [vmem:[%s4 + $0x6c] sm:$0xff]
    %v366 = vld [vmem:[%s4 + $0x74] sm:$0xf]
    %v367 = vld [vmem:[%s4 + $0x78] sm:$0xff]
    %v368 = vld [vmem:[%s4 + $0x80] sm:$0xf]
    %v369 = vld [vmem:[%s4 + $0x84] sm:$0xff]
    %v370 = vld [vmem:[%s4 + $0x8c] sm:$0xf]
    %v371 = vld [vmem:[%s4 + $0x90] sm:$0xff]
    %v372 = vld [vmem:[%s4 + $0x98] sm:$0xf]
    %v373 = vld [vmem:[%s4 + $0x9c] sm:$0xff]
    %v374 = vld [vmem:[%s4 + $0xa4] sm:$0xf]
    %v375 = vld [vmem:[%s4 + $0xa8] sm:$0xff]
    %v376 = vld [vmem:[%s4 + $0xb0] sm:$0xf]
    %v377 = vld [vmem:[%s4 + $0xb4] sm:$0xff]
    %v378 = vld [vmem:[%s4 + $0xbc] sm:$0xf]
    %v379 = vld [vmem:[%s6] sm:$0x7]
    %v380 = vld [vmem:[%s1] sm:$0xff]
    %v381 = vld [vmem:[#allocation2] sm:$0xff]
    %s382 = smul.u32 0, 3
    %s383 = smul.addr %s382, 8
    %s384 = scalar_lea.vmem [#allocation3], %s383
    %v385 = vld [vmem:[%s384] sm:$0xff]
    %v386 = vld [vmem:[%s384 + $0x8] sm:$0xff]
    %v387 = vld [vmem:[%s384 + $0x10] sm:$0xff]
    %v388 = vpack.c.bf16 %v381, %v381
    %v390 = vperm.slane %v379, 0
    %v391 = vperm.slane %v379, 1
    %v392 = vperm.slane %v379, 2
    %v428 = vunpack.c.l.b16 %v347
    %v429 = vunpack.c.h.b16 %v347
    %v430 = vunpack.c.l.b16 %v348
    %v431 = vunpack.c.l.b16 %v349
    %v432 = vunpack.c.h.b16 %v349
    %v433 = vunpack.c.l.b16 %v350
    %v434 = vunpack.c.l.b16 %v351
    %v435 = vunpack.c.h.b16 %v351
    %v436 = vunpack.c.l.b16 %v352
    %v437 = vunpack.c.l.b16 %v353
    %v438 = vunpack.c.h.b16 %v353
    %v439 = vunpack.c.l.b16 %v354
    %v440 = vunpack.c.l.b16 %v355
    %v441 = vunpack.c.h.b16 %v355
    %v442 = vunpack.c.l.b16 %v356
    %v443 = vunpack.c.l.b16 %v357
    %v444 = vunpack.c.h.b16 %v357
    %v445 = vunpack.c.l.b16 %v358
    %v446 = vunpack.c.l.b16 %v359
    %v447 = vunpack.c.h.b16 %v359
    %v448 = vunpack.c.l.b16 %v360
    %v449 = vunpack.c.l.b16 %v361
    %v450 = vunpack.c.h.b16 %v361
    %v451 = vunpack.c.l.b16 %v362
    %v452 = vunpack.c.l.b16 %v363
    %v453 = vunpack.c.h.b16 %v363
    %v454 = vunpack.c.l.b16 %v364
    %v455 = vunpack.c.l.b16 %v365
    %v456 = vunpack.c.h.b16 %v365
    %v457 = vunpack.c.l.b16 %v366
    %v458 = vunpack.c.l.b16 %v367
    %v459 = vunpack.c.h.b16 %v367
    %v460 = vunpack.c.l.b16 %v368
    %v461 = vunpack.c.l.b16 %v369
    %v462 = vunpack.c.h.b16 %v369
    %v463 = vunpack.c.l.b16 %v370
    %v464 = vunpack.c.l.b16 %v371
    %v465 = vunpack.c.h.b16 %v371
    %v466 = vunpack.c.l.b16 %v372
    %v467 = vunpack.c.l.b16 %v373
    %v468 = vunpack.c.h.b16 %v373
    %v469 = vunpack.c.l.b16 %v374
    %v470 = vunpack.c.l.b16 %v375
    %v471 = vunpack.c.h.b16 %v375
    %v472 = vunpack.c.l.b16 %v376
    %v473 = vunpack.c.l.b16 %v377
    %v474 = vunpack.c.h.b16 %v377
    %v475 = vunpack.c.l.b16 %v378
    %v476 = vpack.c.b16 %v431, %v428
    %v477 = vpack.c.b16 %v432, %v429
    %v478 = vpack.c.b16 %v433, %v430
    %v479 = vpack.c.b16 %v437, %v434
    %v480 = vpack.c.b16 %v438, %v435
    %v481 = vpack.c.b16 %v439, %v436
    %v482 = vpack.c.b16 %v443, %v440
    %v483 = vpack.c.b16 %v444, %v441
    %v484 = vpack.c.b16 %v445, %v442
    %v485 = vpack.c.b16 %v449, %v446
    %v486 = vpack.c.b16 %v450, %v447
    %v487 = vpack.c.b16 %v451, %v448
    %v488 = vpack.c.b16 %v455, %v452
    %v489 = vpack.c.b16 %v456, %v453
    %v490 = vpack.c.b16 %v457, %v454
    %v491 = vpack.c.b16 %v461, %v458
    %v492 = vpack.c.b16 %v462, %v459
    %v493 = vpack.c.b16 %v463, %v460
    %v494 = vpack.c.b16 %v467, %v464
    %v495 = vpack.c.b16 %v468, %v465
    %v496 = vpack.c.b16 %v469, %v466
    %v497 = vpack.c.b16 %v473, %v470
    %v498 = vpack.c.b16 %v474, %v471
    %v499 = vpack.c.b16 %v475, %v472
    %524 = vmatpush.bf16.msra.mxu0 %v497
    %525 = vmatpush.bf16.msra.mxu0 %v494
    %526 = vmatpush.bf16.msra.mxu0 %v491
    %527 = vmatpush.bf16.msra.mxu0 %v488
    %528 = vmatpush.bf16.msra.mxu0 %v485
    %529 = vmatpush.bf16.msra.mxu0 %v482
    %530 = vmatpush.bf16.msra.mxu0 %v479
    %531 = vmatpush.bf16.msra.mxu0 %v476
    %532 = vmatmul.bf16.gmra.mxu0 %v388
    %v533 = vpop.f32.mrf.mxu0
    %v534 = vadd.f32 %v390, %v533
    %v535 = vpop.f32.mrf.mxu0
    %536 = vdwg.mxu0
    %537 = vmatpush.bf16.msra.mxu0 %v498
    %538 = vmatpush.bf16.msra.mxu0 %v495
    %539 = vmatpush.bf16.msra.mxu0 %v492
    %540 = vmatpush.bf16.msra.mxu0 %v489
    %541 = vmatpush.bf16.msra.mxu0 %v486
    %542 = vmatpush.bf16.msra.mxu0 %v483
    %543 = vmatpush.bf16.msra.mxu0 %v480
    %544 = vmatpush.bf16.msra.mxu0 %v477
    %545 = vmatmul.bf16.gmra.mxu0 %v388
    %v546 = vpop.f32.mrf.mxu0
    %v547 = vadd.f32 %v391, %v546
    %v548 = vpop.f32.mrf.mxu0
    %549 = vdwg.mxu0
    %550 = vmatpush.bf16.msra.mxu0 %v499
    %551 = vmatpush.bf16.msra.mxu0 %v496
    %552 = vmatpush.bf16.msra.mxu0 %v493
    %553 = vmatpush.bf16.msra.mxu0 %v490
    %554 = vmatpush.bf16.msra.mxu0 %v487
    %555 = vmatpush.bf16.msra.mxu0 %v484
    %556 = vmatpush.bf16.msra.mxu0 %v481
    %557 = vmatpush.bf16.msra.mxu0 %v478
    %558 = vmatmul.bf16.gmra.mxu0 %v388
    %v559 = vpop.f32.mrf.mxu0
    %v560 = vadd.f32 %v392, %v559
    %v561 = vpop.f32.mrf.mxu0
    %562 = vdwg.mxu0
    %v563 = vadd.f32 %v385, %v534
    %v564 = vsub.f32 0.0, %v563
    %v565 = vmul.f32 %v564, 1.442695
    %v566 = vpow.pop %v565
    %v567 = vadd.f32 %v566, 1.0
    %v568 = vrcp.pop %v567
    %v569 = vmul.f32 %v567, %v568
    %v570 = vsub.f32 1.0, %v569
    %v571 = vmul.f32 %v568, %v570
    %v572 = vadd.f32 %v568, %v571
    %vm573 = vweird.f32 %v567
    %vm574 = vweird.f32 %v568
    %vm575 = vmor %vm573, %vm574
    %v576 = vsel %vm575, %v568, %v572
    %v577 = vand.u32 2147483647, %v567
    %vm578 = vcmp.eq.f32.partialorder %v577, 8.507059e+37
    %v579 = vand.u32 %v567, 2147483648
    %v580 = vor.u32 1.1754944e-38, %v579
    %v581 = vsel %vm578, %v580, %v576
    %v582 = vmul.f32 1.0, %v581
    %v583 = vadd.f32 %v386, %v547
    %v584 = vsub.f32 0.0, %v583
    %v585 = vmul.f32 %v584, 1.442695
    %v586 = vpow.pop %v585
    %v587 = vadd.f32 %v586, 1.0
    %v588 = vrcp.pop %v587
    %v589 = vmul.f32 %v587, %v588
    %v590 = vsub.f32 1.0, %v589
    %v591 = vmul.f32 %v588, %v590
    %v592 = vadd.f32 %v588, %v591
    %vm593 = vweird.f32 %v587
    %vm594 = vweird.f32 %v588
    %vm595 = vmor %vm593, %vm594
    %v596 = vsel %vm595, %v588, %v592
    %v597 = vand.u32 2147483647, %v587
    %vm598 = vcmp.eq.f32.partialorder %v597, 8.507059e+37
    %v599 = vand.u32 %v587, 2147483648
    %v600 = vor.u32 1.1754944e-38, %v599
    %v601 = vsel %vm598, %v600, %v596
    %v602 = vmul.f32 1.0, %v601
    %v603 = vmul.f32 %v582, %v560
    %v604 = vadd.f32 %v387, %v603
    %v605 = vtanh.pop %v604
    %v606 = vsub.f32 1.0, %v602
    %v607 = vmul.f32 %v606, %v605
    %v608 = vmul.f32 %v602, %v381
    %v609 = vadd.f32 %v607, %v608
    %v610 = vstv %s25
    %vm611 = vcmp.gt.s32.totalorder %v380, %v610
    %v612 = vsel %vm611, 1, 0
    %613 = vset.pattern.permute.xlu0 0
    %614 = vperm.xlu0 %613, %v612
    %v615 = vpop.permute.xlu0 %614
    %vm616 = vcmp.eq.s32.totalorder %v615, 1
    %v617 = vsel %vm616, %v609, %v381
    %v618 = vsel %vm616, %v609, 0.0
    %619 = vst [vmem:[%s7] sm:$0xff] %v618
    %s620 = smul.u32 1, 3
    %s621 = smul.addr %s620, 8
    %s622 = scalar_lea.vmem [#allocation3], %s621
    %v623 = vld [vmem:[%s622] sm:$0xff]
    %v624 = vld [vmem:[%s622 + $0x8] sm:$0xff]
    %v625 = vld [vmem:[%s622 + $0x10] sm:$0xff]
    %v626 = vpack.c.bf16 %v617, %v617
    %627 = vmatpush.bf16.msra.mxu0 %v497
    %628 = vmatpush.bf16.msra.mxu0 %v494
    %629 = vmatpush.bf16.msra.mxu0 %v491
    %630 = vmatpush.bf16.msra.mxu0 %v488
    %631 = vmatpush.bf16.msra.mxu0 %v485
    %632 = vmatpush.bf16.msra.mxu0 %v482
    %633 = vmatpush.bf16.msra.mxu0 %v479
    %634 = vmatpush.bf16.msra.mxu0 %v476
    %635 = vmatmul.bf16.gmra.mxu0 %v626
    %v636 = vpop.f32.mrf.mxu0
    %v637 = vadd.f32 %v390, %v636
    %v638 = vpop.f32.mrf.mxu0
    %639 = vdwg.mxu0
    %640 = vmatpush.bf16.msra.mxu0 %v498
    %641 = vmatpush.bf16.msra.mxu0 %v495
    %642 = vmatpush.bf16.msra.mxu0 %v492
    %643 = vmatpush.bf16.msra.mxu0 %v489
    %644 = vmatpush.bf16.msra.mxu0 %v486
    %645 = vmatpush.bf16.msra.mxu0 %v483
    %646 = vmatpush.bf16.msra.mxu0 %v480
    %647 = vmatpush.bf16.msra.mxu0 %v477
    %648 = vmatmul.bf16.gmra.mxu0 %v626
    %v649 = vpop.f32.mrf.mxu0
    %v650 = vadd.f32 %v391, %v649
    %v651 = vpop.f32.mrf.mxu0
    %652 = vdwg.mxu0
    %653 = vmatpush.bf16.msra.mxu0 %v499
    %654 = vmatpush.bf16.msra.mxu0 %v496
    %655 = vmatpush.bf16.msra.mxu0 %v493
    %656 = vmatpush.bf16.msra.mxu0 %v490
    %657 = vmatpush.bf16.msra.mxu0 %v487
    %658 = vmatpush.bf16.msra.mxu0 %v484
    %659 = vmatpush.bf16.msra.mxu0 %v481
    %660 = vmatpush.bf16.msra.mxu0 %v478
    %661 = vmatmul.bf16.gmra.mxu0 %v626
    %v662 = vpop.f32.mrf.mxu0
    %v663 = vadd.f32 %v392, %v662
    %v664 = vpop.f32.mrf.mxu0
    %665 = vdwg.mxu0
    %v666 = vadd.f32 %v623, %v637
    %v667 = vsub.f32 0.0, %v666
    %v668 = vmul.f32 %v667, 1.442695
    %v669 = vpow.pop %v668
    %v670 = vadd.f32 %v669, 1.0
    %v671 = vrcp.pop %v670
    %v672 = vmul.f32 %v670, %v671
    %v673 = vsub.f32 1.0, %v672
    %v674 = vmul.f32 %v671, %v673
    %v675 = vadd.f32 %v671, %v674
    %vm676 = vweird.f32 %v670
    %vm677 = vweird.f32 %v671
    %vm678 = vmor %vm676, %vm677
    %v679 = vsel %vm678, %v671, %v675
    %v680 = vand.u32 2147483647, %v670
    %vm681 = vcmp.eq.f32.partialorder %v680, 8.507059e+37
    %v682 = vand.u32 %v670, 2147483648
    %v683 = vor.u32 1.1754944e-38, %v682
    %v684 = vsel %vm681, %v683, %v679
    %v685 = vmul.f32 1.0, %v684
    %v686 = vadd.f32 %v624, %v650
    %v687 = vsub.f32 0.0, %v686
    %v688 = vmul.f32 %v687, 1.442695
    %v689 = vpow.pop %v688
    %v690 = vadd.f32 %v689, 1.0
    %v691 = vrcp.pop %v690
    %v692 = vmul.f32 %v690, %v691
    %v693 = vsub.f32 1.0, %v692
    %v694 = vmul.f32 %v691, %v693
    %v695 = vadd.f32 %v691, %v694
    %vm696 = vweird.f32 %v690
    %vm697 = vweird.f32 %v691
    %vm698 = vmor %vm696, %vm697
    %v699 = vsel %vm698, %v691, %v695
    %v700 = vand.u32 2147483647, %v690
    %vm701 = vcmp.eq.f32.partialorder %v700, 8.507059e+37
    %v702 = vand.u32 %v690, 2147483648
    %v703 = vor.u32 1.1754944e-38, %v702
    %v704 = vsel %vm701, %v703, %v699
    %v705 = vmul.f32 1.0, %v704
    %v706 = vmul.f32 %v685, %v663
    %v707 = vadd.f32 %v625, %v706
    %v708 = vtanh.pop %v707
    %v709 = vsub.f32 1.0, %v705
    %v710 = vmul.f32 %v709, %v708
    %v711 = vmul.f32 %v705, %v617
    %v712 = vadd.f32 %v710, %v711
    %s713 = sadd.s32 %s25, 1
    %v714 = vstv %s713
    %vm715 = vcmp.gt.s32.totalorder %v380, %v714
    %v716 = vsel %vm715, 1, 0
    %717 = vset.pattern.permute.xlu0 0
    %718 = vperm.xlu0 %717, %v716
    %v719 = vpop.permute.xlu0 %718
    %vm720 = vcmp.eq.s32.totalorder %v719, 1
    %v721 = vsel %vm720, %v712, %v617
    %v722 = vsel %vm720, %v712, 0.0
    %s723 = scalar_lea.vmem %s7, 8
    %724 = vst [vmem:[%s723] sm:$0xff] %v722
    %s725 = smul.u32 2, 3
    %s726 = smul.addr %s725, 8
    %s727 = scalar_lea.vmem [#allocation3], %s726
    %v728 = vld [vmem:[%s727] sm:$0xff]
    %v729 = vld [vmem:[%s727 + $0x8] sm:$0xff]
    %v730 = vld [vmem:[%s727 + $0x10] sm:$0xff]
    %v731 = vpack.c.bf16 %v721, %v721
    %732 = vmatpush.bf16.msra.mxu0 %v497
    %733 = vmatpush.bf16.msra.mxu0 %v494
    %734 = vmatpush.bf16.msra.mxu0 %v491
    %735 = vmatpush.bf16.msra.mxu0 %v488
    %736 = vmatpush.bf16.msra.mxu0 %v485
    %737 = vmatpush.bf16.msra.mxu0 %v482
    %738 = vmatpush.bf16.msra.mxu0 %v479
    %739 = vmatpush.bf16.msra.mxu0 %v476
    %740 = vmatmul.bf16.gmra.mxu0 %v731
    %v741 = vpop.f32.mrf.mxu0
    %v742 = vadd.f32 %v390, %v741
    %v743 = vpop.f32.mrf.mxu0
    %744 = vdwg.mxu0
    %745 = vmatpush.bf16.msra.mxu0 %v498
    %746 = vmatpush.bf16.msra.mxu0 %v495
    %747 = vmatpush.bf16.msra.mxu0 %v492
    %748 = vmatpush.bf16.msra.mxu0 %v489
    %749 = vmatpush.bf16.msra.mxu0 %v486
    %750 = vmatpush.bf16.msra.mxu0 %v483
    %751 = vmatpush.bf16.msra.mxu0 %v480
    %752 = vmatpush.bf16.msra.mxu0 %v477
    %753 = vmatmul.bf16.gmra.mxu0 %v731
    %v754 = vpop.f32.mrf.mxu0
    %v755 = vadd.f32 %v391, %v754
    %v756 = vpop.f32.mrf.mxu0
    %757 = vdwg.mxu0
    %758 = vmatpush.bf16.msra.mxu0 %v499
    %759 = vmatpush.bf16.msra.mxu0 %v496
    %760 = vmatpush.bf16.msra.mxu0 %v493
    %761 = vmatpush.bf16.msra.mxu0 %v490
    %762 = vmatpush.bf16.msra.mxu0 %v487
    %763 = vmatpush.bf16.msra.mxu0 %v484
    %764 = vmatpush.bf16.msra.mxu0 %v481
    %765 = vmatpush.bf16.msra.mxu0 %v478
    %766 = vmatmul.bf16.gmra.mxu0 %v731
    %v767 = vpop.f32.mrf.mxu0
    %v768 = vadd.f32 %v392, %v767
    %v769 = vpop.f32.mrf.mxu0
    %770 = vdwg.mxu0
    %v771 = vadd.f32 %v728, %v742
    %v772 = vsub.f32 0.0, %v771
    %v773 = vmul.f32 %v772, 1.442695
    %v774 = vpow.pop %v773
    %v775 = vadd.f32 %v774, 1.0
    %v776 = vrcp.pop %v775
    %v777 = vmul.f32 %v775, %v776
    %v778 = vsub.f32 1.0, %v777
    %v779 = vmul.f32 %v776, %v778
    %v780 = vadd.f32 %v776, %v779
    %vm781 = vweird.f32 %v775
    %vm782 = vweird.f32 %v776
    %vm783 = vmor %vm781, %vm782
    %v784 = vsel %vm783, %v776, %v780
    %v785 = vand.u32 2147483647, %v775
    %vm786 = vcmp.eq.f32.partialorder %v785, 8.507059e+37
    %v787 = vand.u32 %v775, 2147483648
    %v788 = vor.u32 1.1754944e-38, %v787
    %v789 = vsel %vm786, %v788, %v784
    %v790 = vmul.f32 1.0, %v789
    %v791 = vadd.f32 %v729, %v755
    %v792 = vsub.f32 0.0, %v791
    %v793 = vmul.f32 %v792, 1.442695
    %v794 = vpow.pop %v793
    %v795 = vadd.f32 %v794, 1.0
    %v796 = vrcp.pop %v795
    %v797 = vmul.f32 %v795, %v796
    %v798 = vsub.f32 1.0, %v797
    %v799 = vmul.f32 %v796, %v798
    %v800 = vadd.f32 %v796, %v799
    %vm801 = vweird.f32 %v795
    %vm802 = vweird.f32 %v796
    %vm803 = vmor %vm801, %vm802
    %v804 = vsel %vm803, %v796, %v800
    %v805 = vand.u32 2147483647, %v795
    %vm806 = vcmp.eq.f32.partialorder %v805, 8.507059e+37
    %v807 = vand.u32 %v795, 2147483648
    %v808 = vor.u32 1.1754944e-38, %v807
    %v809 = vsel %vm806, %v808, %v804
    %v810 = vmul.f32 1.0, %v809
    %v811 = vmul.f32 %v790, %v768
    %v812 = vadd.f32 %v730, %v811
    %v813 = vtanh.pop %v812
    %v814 = vsub.f32 1.0, %v810
    %v815 = vmul.f32 %v814, %v813
    %v816 = vmul.f32 %v810, %v721
    %v817 = vadd.f32 %v815, %v816
    %s818 = sadd.s32 %s25, 2
    %v819 = vstv %s818
    %vm820 = vcmp.gt.s32.totalorder %v380, %v819
    %v821 = vsel %vm820, 1, 0
    %822 = vset.pattern.permute.xlu0 0
    %823 = vperm.xlu0 %822, %v821
    %v824 = vpop.permute.xlu0 %823
    %vm825 = vcmp.eq.s32.totalorder %v824, 1
    %v826 = vsel %vm825, %v817, %v721
    %v827 = vsel %vm825, %v817, 0.0
    %s828 = scalar_lea.vmem %s7, 16
    %829 = vst [vmem:[%s828] sm:$0xff] %v827
    %s830 = smul.u32 3, 3
    %s831 = smul.addr %s830, 8
    %s832 = scalar_lea.vmem [#allocation3], %s831
    %v833 = vld [vmem:[%s832] sm:$0xff]
    %v834 = vld [vmem:[%s832 + $0x8] sm:$0xff]
    %v835 = vld [vmem:[%s832 + $0x10] sm:$0xff]
    %v836 = vpack.c.bf16 %v826, %v826
    %837 = vmatpush.bf16.msra.mxu0 %v497
    %838 = vmatpush.bf16.msra.mxu0 %v494
    %839 = vmatpush.bf16.msra.mxu0 %v491
    %840 = vmatpush.bf16.msra.mxu0 %v488
    %841 = vmatpush.bf16.msra.mxu0 %v485
    %842 = vmatpush.bf16.msra.mxu0 %v482
    %843 = vmatpush.bf16.msra.mxu0 %v479
    %844 = vmatpush.bf16.msra.mxu0 %v476
    %845 = vmatmul.bf16.gmra.mxu0 %v836
    %v846 = vpop.f32.mrf.mxu0
    %v847 = vadd.f32 %v390, %v846
    %v848 = vpop.f32.mrf.mxu0
    %849 = vdwg.mxu0
    %850 = vmatpush.bf16.msra.mxu0 %v498
    %851 = vmatpush.bf16.msra.mxu0 %v495
    %852 = vmatpush.bf16.msra.mxu0 %v492
    %853 = vmatpush.bf16.msra.mxu0 %v489
    %854 = vmatpush.bf16.msra.mxu0 %v486
    %855 = vmatpush.bf16.msra.mxu0 %v483
    %856 = vmatpush.bf16.msra.mxu0 %v480
    %857 = vmatpush.bf16.msra.mxu0 %v477
    %858 = vmatmul.bf16.gmra.mxu0 %v836
    %v859 = vpop.f32.mrf.mxu0
    %v860 = vadd.f32 %v391, %v859
    %v861 = vpop.f32.mrf.mxu0
    %862 = vdwg.mxu0
    %863 = vmatpush.bf16.msra.mxu0 %v499
    %864 = vmatpush.bf16.msra.mxu0 %v496
    %865 = vmatpush.bf16.msra.mxu0 %v493
    %866 = vmatpush.bf16.msra.mxu0 %v490
    %867 = vmatpush.bf16.msra.mxu0 %v487
    %868 = vmatpush.bf16.msra.mxu0 %v484
    %869 = vmatpush.bf16.msra.mxu0 %v481
    %870 = vmatpush.bf16.msra.mxu0 %v478
    %871 = vmatmul.bf16.gmra.mxu0 %v836
    %v872 = vpop.f32.mrf.mxu0
    %v873 = vadd.f32 %v392, %v872
    %v874 = vpop.f32.mrf.mxu0
    %875 = vdwg.mxu0
    %v876 = vadd.f32 %v833, %v847
    %v877 = vsub.f32 0.0, %v876
    %v878 = vmul.f32 %v877, 1.442695
    %v879 = vpow.pop %v878
    %v880 = vadd.f32 %v879, 1.0
    %v881 = vrcp.pop %v880
    %v882 = vmul.f32 %v880, %v881
    %v883 = vsub.f32 1.0, %v882
    %v884 = vmul.f32 %v881, %v883
    %v885 = vadd.f32 %v881, %v884
    %vm886 = vweird.f32 %v880
    %vm887 = vweird.f32 %v881
    %vm888 = vmor %vm886, %vm887
    %v889 = vsel %vm888, %v881, %v885
    %v890 = vand.u32 2147483647, %v880
    %vm891 = vcmp.eq.f32.partialorder %v890, 8.507059e+37
    %v892 = vand.u32 %v880, 2147483648
    %v893 = vor.u32 1.1754944e-38, %v892
    %v894 = vsel %vm891, %v893, %v889
    %v895 = vmul.f32 1.0, %v894
    %v896 = vadd.f32 %v834, %v860
    %v897 = vsub.f32 0.0, %v896
    %v898 = vmul.f32 %v897, 1.442695
    %v899 = vpow.pop %v898
    %v900 = vadd.f32 %v899, 1.0
    %v901 = vrcp.pop %v900
    %v902 = vmul.f32 %v900, %v901
    %v903 = vsub.f32 1.0, %v902
    %v904 = vmul.f32 %v901, %v903
    %v905 = vadd.f32 %v901, %v904
    %vm906 = vweird.f32 %v900
    %vm907 = vweird.f32 %v901
    %vm908 = vmor %vm906, %vm907
    %v909 = vsel %vm908, %v901, %v905
    %v910 = vand.u32 2147483647, %v900
    %vm911 = vcmp.eq.f32.partialorder %v910, 8.507059e+37
    %v912 = vand.u32 %v900, 2147483648
    %v913 = vor.u32 1.1754944e-38, %v912
    %v914 = vsel %vm911, %v913, %v909
    %v915 = vmul.f32 1.0, %v914
    %v916 = vmul.f32 %v895, %v873
    %v917 = vadd.f32 %v835, %v916
    %v918 = vtanh.pop %v917
    %v919 = vsub.f32 1.0, %v915
    %v920 = vmul.f32 %v919, %v918
    %v921 = vmul.f32 %v915, %v826
    %v922 = vadd.f32 %v920, %v921
    %s923 = sadd.s32 %s25, 3
    %v924 = vstv %s923
    %vm925 = vcmp.gt.s32.totalorder %v380, %v924
    %v926 = vsel %vm925, 1, 0
    %927 = vset.pattern.permute.xlu0 0
    %928 = vperm.xlu0 %927, %v926
    %v929 = vpop.permute.xlu0 %928
    %vm930 = vcmp.eq.s32.totalorder %v929, 1
    %v931 = vsel %vm930, %v922, %v826
    %v932 = vsel %vm930, %v922, 0.0
    %s933 = scalar_lea.vmem %s7, 24
    %934 = vst [vmem:[%s933] sm:$0xff] %v932
    %s935 = smul.u32 4, 3
    %s936 = smul.addr %s935, 8
    %s937 = scalar_lea.vmem [#allocation3], %s936
    %v938 = vld [vmem:[%s937] sm:$0xff]
    %v939 = vld [vmem:[%s937 + $0x8] sm:$0xff]
    %v940 = vld [vmem:[%s937 + $0x10] sm:$0xff]
    %v941 = vpack.c.bf16 %v931, %v931
    %942 = vmatpush.bf16.msra.mxu0 %v497
    %943 = vmatpush.bf16.msra.mxu0 %v494
    %944 = vmatpush.bf16.msra.mxu0 %v491
    %945 = vmatpush.bf16.msra.mxu0 %v488
    %946 = vmatpush.bf16.msra.mxu0 %v485
    %947 = vmatpush.bf16.msra.mxu0 %v482
    %948 = vmatpush.bf16.msra.mxu0 %v479
    %949 = vmatpush.bf16.msra.mxu0 %v476
    %950 = vmatmul.bf16.gmra.mxu0 %v941
    %v951 = vpop.f32.mrf.mxu0
    %v952 = vadd.f32 %v390, %v951
    %v953 = vpop.f32.mrf.mxu0
    %954 = vdwg.mxu0
    %955 = vmatpush.bf16.msra.mxu0 %v498
    %956 = vmatpush.bf16.msra.mxu0 %v495
    %957 = vmatpush.bf16.msra.mxu0 %v492
    %958 = vmatpush.bf16.msra.mxu0 %v489
    %959 = vmatpush.bf16.msra.mxu0 %v486
    %960 = vmatpush.bf16.msra.mxu0 %v483
    %961 = vmatpush.bf16.msra.mxu0 %v480
    %962 = vmatpush.bf16.msra.mxu0 %v477
    %963 = vmatmul.bf16.gmra.mxu0 %v941
    %v964 = vpop.f32.mrf.mxu0
    %v965 = vadd.f32 %v391, %v964
    %v966 = vpop.f32.mrf.mxu0
    %967 = vdwg.mxu0
    %968 = vmatpush.bf16.msra.mxu0 %v499
    %969 = vmatpush.bf16.msra.mxu0 %v496
    %970 = vmatpush.bf16.msra.mxu0 %v493
    %971 = vmatpush.bf16.msra.mxu0 %v490
    %972 = vmatpush.bf16.msra.mxu0 %v487
    %973 = vmatpush.bf16.msra.mxu0 %v484
    %974 = vmatpush.bf16.msra.mxu0 %v481
    %975 = vmatpush.bf16.msra.mxu0 %v478
    %976 = vmatmul.bf16.gmra.mxu0 %v941
    %v977 = vpop.f32.mrf.mxu0
    %v978 = vadd.f32 %v392, %v977
    %v979 = vpop.f32.mrf.mxu0
    %980 = vdwg.mxu0
    %v981 = vadd.f32 %v938, %v952
    %v982 = vsub.f32 0.0, %v981
    %v983 = vmul.f32 %v982, 1.442695
    %v984 = vpow.pop %v983
    %v985 = vadd.f32 %v984, 1.0
    %v986 = vrcp.pop %v985
    %v987 = vmul.f32 %v985, %v986
    %v988 = vsub.f32 1.0, %v987
    %v989 = vmul.f32 %v986, %v988
    %v990 = vadd.f32 %v986, %v989
    %vm991 = vweird.f32 %v985
    %vm992 = vweird.f32 %v986
    %vm993 = vmor %vm991, %vm992
    %v994 = vsel %vm993, %v986, %v990
    %v995 = vand.u32 2147483647, %v985
    %vm996 = vcmp.eq.f32.partialorder %v995, 8.507059e+37
    %v997 = vand.u32 %v985, 2147483648
    %v998 = vor.u32 1.1754944e-38, %v997
    %v999 = vsel %vm996, %v998, %v994
    %v1000 = vmul.f32 1.0, %v999
    %v1001 = vadd.f32 %v939, %v965
    %v1002 = vsub.f32 0.0, %v1001
    %v1003 = vmul.f32 %v1002, 1.442695
    %v1004 = vpow.pop %v1003
    %v1005 = vadd.f32 %v1004, 1.0
    %v1006 = vrcp.pop %v1005
    %v1007 = vmul.f32 %v1005, %v1006
    %v1008 = vsub.f32 1.0, %v1007
    %v1009 = vmul.f32 %v1006, %v1008
    %v1010 = vadd.f32 %v1006, %v1009
    %vm1011 = vweird.f32 %v1005
    %vm1012 = vweird.f32 %v1006
    %vm1013 = vmor %vm1011, %vm1012
    %v1014 = vsel %vm1013, %v1006, %v1010
    %v1015 = vand.u32 2147483647, %v1005
    %vm1016 = vcmp.eq.f32.partialorder %v1015, 8.507059e+37
    %v1017 = vand.u32 %v1005, 2147483648
    %v1018 = vor.u32 1.1754944e-38, %v1017
    %v1019 = vsel %vm1016, %v1018, %v1014
    %v1020 = vmul.f32 1.0, %v1019
    %v1021 = vmul.f32 %v1000, %v978
    %v1022 = vadd.f32 %v940, %v1021
    %v1023 = vtanh.pop %v1022
    %v1024 = vsub.f32 1.0, %v1020
    %v1025 = vmul.f32 %v1024, %v1023
    %v1026 = vmul.f32 %v1020, %v931
    %v1027 = vadd.f32 %v1025, %v1026
    %s1028 = sadd.s32 %s25, 4
    %v1029 = vstv %s1028
    %vm1030 = vcmp.gt.s32.totalorder %v380, %v1029
    %v1031 = vsel %vm1030, 1, 0
    %1032 = vset.pattern.permute.xlu0 0
    %1033 = vperm.xlu0 %1032, %v1031
    %v1034 = vpop.permute.xlu0 %1033
    %vm1035 = vcmp.eq.s32.totalorder %v1034, 1
    %v1036 = vsel %vm1035, %v1027, %v931
    %v1037 = vsel %vm1035, %v1027, 0.0
    %s1038 = scalar_lea.vmem %s7, 32
    %1039 = vst [vmem:[%s1038] sm:$0xff] %v1037
    %s1040 = smul.u32 5, 3
    %s1041 = smul.addr %s1040, 8
    %s1042 = scalar_lea.vmem [#allocation3], %s1041
    %v1043 = vld [vmem:[%s1042] sm:$0xff]
    %v1044 = vld [vmem:[%s1042 + $0x8] sm:$0xff]
    %v1045 = vld [vmem:[%s1042 + $0x10] sm:$0xff]
    %v1046 = vpack.c.bf16 %v1036, %v1036
    %1047 = vmatpush.bf16.msra.mxu0 %v497
    %1048 = vmatpush.bf16.msra.mxu0 %v494
    %1049 = vmatpush.bf16.msra.mxu0 %v491
    %1050 = vmatpush.bf16.msra.mxu0 %v488
    %1051 = vmatpush.bf16.msra.mxu0 %v485
    %1052 = vmatpush.bf16.msra.mxu0 %v482
    %1053 = vmatpush.bf16.msra.mxu0 %v479
    %1054 = vmatpush.bf16.msra.mxu0 %v476
    %1055 = vmatmul.bf16.gmra.mxu0 %v1046
    %v1056 = vpop.f32.mrf.mxu0
    %v1057 = vadd.f32 %v390, %v1056
    %v1058 = vpop.f32.mrf.mxu0
    %1059 = vdwg.mxu0
    %1060 = vmatpush.bf16.msra.mxu0 %v498
    %1061 = vmatpush.bf16.msra.mxu0 %v495
    %1062 = vmatpush.bf16.msra.mxu0 %v492
    %1063 = vmatpush.bf16.msra.mxu0 %v489
    %1064 = vmatpush.bf16.msra.mxu0 %v486
    %1065 = vmatpush.bf16.msra.mxu0 %v483
    %1066 = vmatpush.bf16.msra.mxu0 %v480
    %1067 = vmatpush.bf16.msra.mxu0 %v477
    %1068 = vmatmul.bf16.gmra.mxu0 %v1046
    %v1069 = vpop.f32.mrf.mxu0
    %v1070 = vadd.f32 %v391, %v1069
    %v1071 = vpop.f32.mrf.mxu0
    %1072 = vdwg.mxu0
    %1073 = vmatpush.bf16.msra.mxu0 %v499
    %1074 = vmatpush.bf16.msra.mxu0 %v496
    %1075 = vmatpush.bf16.msra.mxu0 %v493
    %1076 = vmatpush.bf16.msra.mxu0 %v490
    %1077 = vmatpush.bf16.msra.mxu0 %v487
    %1078 = vmatpush.bf16.msra.mxu0 %v484
    %1079 = vmatpush.bf16.msra.mxu0 %v481
    %1080 = vmatpush.bf16.msra.mxu0 %v478
    %1081 = vmatmul.bf16.gmra.mxu0 %v1046
    %v1082 = vpop.f32.mrf.mxu0
    %v1083 = vadd.f32 %v392, %v1082
    %v1084 = vpop.f32.mrf.mxu0
    %1085 = vdwg.mxu0
    %v1086 = vadd.f32 %v1043, %v1057
    %v1087 = vsub.f32 0.0, %v1086
    %v1088 = vmul.f32 %v1087, 1.442695
    %v1089 = vpow.pop %v1088
    %v1090 = vadd.f32 %v1089, 1.0
    %v1091 = vrcp.pop %v1090
    %v1092 = vmul.f32 %v1090, %v1091
    %v1093 = vsub.f32 1.0, %v1092
    %v1094 = vmul.f32 %v1091, %v1093
    %v1095 = vadd.f32 %v1091, %v1094
    %vm1096 = vweird.f32 %v1090
    %vm1097 = vweird.f32 %v1091
    %vm1098 = vmor %vm1096, %vm1097
    %v1099 = vsel %vm1098, %v1091, %v1095
    %v1100 = vand.u32 2147483647, %v1090
    %vm1101 = vcmp.eq.f32.partialorder %v1100, 8.507059e+37
    %v1102 = vand.u32 %v1090, 2147483648
    %v1103 = vor.u32 1.1754944e-38, %v1102
    %v1104 = vsel %vm1101, %v1103, %v1099
    %v1105 = vmul.f32 1.0, %v1104
    %v1106 = vadd.f32 %v1044, %v1070
    %v1107 = vsub.f32 0.0, %v1106
    %v1108 = vmul.f32 %v1107, 1.442695
    %v1109 = vpow.pop %v1108
    %v1110 = vadd.f32 %v1109, 1.0
    %v1111 = vrcp.pop %v1110
    %v1112 = vmul.f32 %v1110, %v1111
    %v1113 = vsub.f32 1.0, %v1112
    %v1114 = vmul.f32 %v1111, %v1113
    %v1115 = vadd.f32 %v1111, %v1114
    %vm1116 = vweird.f32 %v1110
    %vm1117 = vweird.f32 %v1111
    %vm1118 = vmor %vm1116, %vm1117
    %v1119 = vsel %vm1118, %v1111, %v1115
    %v1120 = vand.u32 2147483647, %v1110
    %vm1121 = vcmp.eq.f32.partialorder %v1120, 8.507059e+37
    %v1122 = vand.u32 %v1110, 2147483648
    %v1123 = vor.u32 1.1754944e-38, %v1122
    %v1124 = vsel %vm1121, %v1123, %v1119
    %v1125 = vmul.f32 1.0, %v1124
    %v1126 = vmul.f32 %v1105, %v1083
    %v1127 = vadd.f32 %v1045, %v1126
    %v1128 = vtanh.pop %v1127
    %v1129 = vsub.f32 1.0, %v1125
    %v1130 = vmul.f32 %v1129, %v1128
    %v1131 = vmul.f32 %v1125, %v1036
    %v1132 = vadd.f32 %v1130, %v1131
    %s1133 = sadd.s32 %s25, 5
    %v1134 = vstv %s1133
    %vm1135 = vcmp.gt.s32.totalorder %v380, %v1134
    %v1136 = vsel %vm1135, 1, 0
    %1137 = vset.pattern.permute.xlu0 0
    %1138 = vperm.xlu0 %1137, %v1136
    %v1139 = vpop.permute.xlu0 %1138
    %vm1140 = vcmp.eq.s32.totalorder %v1139, 1
    %v1141 = vsel %vm1140, %v1132, %v1036
    %v1142 = vsel %vm1140, %v1132, 0.0
    %s1143 = scalar_lea.vmem %s7, 40
    %1144 = vst [vmem:[%s1143] sm:$0xff] %v1142
    %s1145 = smul.u32 6, 3
    %s1146 = smul.addr %s1145, 8
    %s1147 = scalar_lea.vmem [#allocation3], %s1146
    %v1148 = vld [vmem:[%s1147] sm:$0xff]
    %v1149 = vld [vmem:[%s1147 + $0x8] sm:$0xff]
    %v1150 = vld [vmem:[%s1147 + $0x10] sm:$0xff]
    %v1151 = vpack.c.bf16 %v1141, %v1141
    %1152 = vmatpush.bf16.msra.mxu0 %v497
    %1153 = vmatpush.bf16.msra.mxu0 %v494
    %1154 = vmatpush.bf16.msra.mxu0 %v491
    %1155 = vmatpush.bf16.msra.mxu0 %v488
    %1156 = vmatpush.bf16.msra.mxu0 %v485
    %1157 = vmatpush.bf16.msra.mxu0 %v482
    %1158 = vmatpush.bf16.msra.mxu0 %v479
    %1159 = vmatpush.bf16.msra.mxu0 %v476
    %1160 = vmatmul.bf16.gmra.mxu0 %v1151
    %v1161 = vpop.f32.mrf.mxu0
    %v1162 = vadd.f32 %v390, %v1161
    %v1163 = vpop.f32.mrf.mxu0
    %1164 = vdwg.mxu0
    %1165 = vmatpush.bf16.msra.mxu0 %v498
    %1166 = vmatpush.bf16.msra.mxu0 %v495
    %1167 = vmatpush.bf16.msra.mxu0 %v492
    %1168 = vmatpush.bf16.msra.mxu0 %v489
    %1169 = vmatpush.bf16.msra.mxu0 %v486
    %1170 = vmatpush.bf16.msra.mxu0 %v483
    %1171 = vmatpush.bf16.msra.mxu0 %v480
    %1172 = vmatpush.bf16.msra.mxu0 %v477
    %1173 = vmatmul.bf16.gmra.mxu0 %v1151
    %v1174 = vpop.f32.mrf.mxu0
    %v1175 = vadd.f32 %v391, %v1174
    %v1176 = vpop.f32.mrf.mxu0
    %1177 = vdwg.mxu0
    %1178 = vmatpush.bf16.msra.mxu0 %v499
    %1179 = vmatpush.bf16.msra.mxu0 %v496
    %1180 = vmatpush.bf16.msra.mxu0 %v493
    %1181 = vmatpush.bf16.msra.mxu0 %v490
    %1182 = vmatpush.bf16.msra.mxu0 %v487
    %1183 = vmatpush.bf16.msra.mxu0 %v484
    %1184 = vmatpush.bf16.msra.mxu0 %v481
    %1185 = vmatpush.bf16.msra.mxu0 %v478
    %1186 = vmatmul.bf16.gmra.mxu0 %v1151
    %v1187 = vpop.f32.mrf.mxu0
    %v1188 = vadd.f32 %v392, %v1187
    %v1189 = vpop.f32.mrf.mxu0
    %1190 = vdwg.mxu0
    %v1191 = vadd.f32 %v1148, %v1162
    %v1192 = vsub.f32 0.0, %v1191
    %v1193 = vmul.f32 %v1192, 1.442695
    %v1194 = vpow.pop %v1193
    %v1195 = vadd.f32 %v1194, 1.0
    %v1196 = vrcp.pop %v1195
    %v1197 = vmul.f32 %v1195, %v1196
    %v1198 = vsub.f32 1.0, %v1197
    %v1199 = vmul.f32 %v1196, %v1198
    %v1200 = vadd.f32 %v1196, %v1199
    %vm1201 = vweird.f32 %v1195
    %vm1202 = vweird.f32 %v1196
    %vm1203 = vmor %vm1201, %vm1202
    %v1204 = vsel %vm1203, %v1196, %v1200
    %v1205 = vand.u32 2147483647, %v1195
    %vm1206 = vcmp.eq.f32.partialorder %v1205, 8.507059e+37
    %v1207 = vand.u32 %v1195, 2147483648
    %v1208 = vor.u32 1.1754944e-38, %v1207
    %v1209 = vsel %vm1206, %v1208, %v1204
    %v1210 = vmul.f32 1.0, %v1209
    %v1211 = vadd.f32 %v1149, %v1175
    %v1212 = vsub.f32 0.0, %v1211
    %v1213 = vmul.f32 %v1212, 1.442695
    %v1214 = vpow.pop %v1213
    %v1215 = vadd.f32 %v1214, 1.0
    %v1216 = vrcp.pop %v1215
    %v1217 = vmul.f32 %v1215, %v1216
    %v1218 = vsub.f32 1.0, %v1217
    %v1219 = vmul.f32 %v1216, %v1218
    %v1220 = vadd.f32 %v1216, %v1219
    %vm1221 = vweird.f32 %v1215
    %vm1222 = vweird.f32 %v1216
    %vm1223 = vmor %vm1221, %vm1222
    %v1224 = vsel %vm1223, %v1216, %v1220
    %v1225 = vand.u32 2147483647, %v1215
    %vm1226 = vcmp.eq.f32.partialorder %v1225, 8.507059e+37
    %v1227 = vand.u32 %v1215, 2147483648
    %v1228 = vor.u32 1.1754944e-38, %v1227
    %v1229 = vsel %vm1226, %v1228, %v1224
    %v1230 = vmul.f32 1.0, %v1229
    %v1231 = vmul.f32 %v1210, %v1188
    %v1232 = vadd.f32 %v1150, %v1231
    %v1233 = vtanh.pop %v1232
    %v1234 = vsub.f32 1.0, %v1230
    %v1235 = vmul.f32 %v1234, %v1233
    %v1236 = vmul.f32 %v1230, %v1141
    %v1237 = vadd.f32 %v1235, %v1236
    %s1238 = sadd.s32 %s25, 6
    %v1239 = vstv %s1238
    %vm1240 = vcmp.gt.s32.totalorder %v380, %v1239
    %v1241 = vsel %vm1240, 1, 0
    %1242 = vset.pattern.permute.xlu0 0
    %1243 = vperm.xlu0 %1242, %v1241
    %v1244 = vpop.permute.xlu0 %1243
    %vm1245 = vcmp.eq.s32.totalorder %v1244, 1
    %v1246 = vsel %vm1245, %v1237, %v1141
    %v1247 = vsel %vm1245, %v1237, 0.0
    %s1248 = scalar_lea.vmem %s7, 48
    %1249 = vst [vmem:[%s1248] sm:$0xff] %v1247
    %s1250 = smul.u32 7, 3
    %s1251 = smul.addr %s1250, 8
    %s1252 = scalar_lea.vmem [#allocation3], %s1251
    %v1253 = vld [vmem:[%s1252] sm:$0xff]
    %v1254 = vld [vmem:[%s1252 + $0x8] sm:$0xff]
    %v1255 = vld [vmem:[%s1252 + $0x10] sm:$0xff]
    %v1256 = vpack.c.bf16 %v1246, %v1246
    %1257 = vmatpush.bf16.msra.mxu0 %v497
    %1258 = vmatpush.bf16.msra.mxu0 %v494
    %1259 = vmatpush.bf16.msra.mxu0 %v491
    %1260 = vmatpush.bf16.msra.mxu0 %v488
    %1261 = vmatpush.bf16.msra.mxu0 %v485
    %1262 = vmatpush.bf16.msra.mxu0 %v482
    %1263 = vmatpush.bf16.msra.mxu0 %v479
    %1264 = vmatpush.bf16.msra.mxu0 %v476
    %1265 = vmatmul.bf16.gmra.mxu0 %v1256
    %v1266 = vpop.f32.mrf.mxu0
    %v1267 = vadd.f32 %v390, %v1266
    %v1268 = vpop.f32.mrf.mxu0
    %1269 = vdwg.mxu0
    %1270 = vmatpush.bf16.msra.mxu0 %v498
    %1271 = vmatpush.bf16.msra.mxu0 %v495
    %1272 = vmatpush.bf16.msra.mxu0 %v492
    %1273 = vmatpush.bf16.msra.mxu0 %v489
    %1274 = vmatpush.bf16.msra.mxu0 %v486
    %1275 = vmatpush.bf16.msra.mxu0 %v483
    %1276 = vmatpush.bf16.msra.mxu0 %v480
    %1277 = vmatpush.bf16.msra.mxu0 %v477
    %1278 = vmatmul.bf16.gmra.mxu0 %v1256
    %v1279 = vpop.f32.mrf.mxu0
    %v1280 = vadd.f32 %v391, %v1279
    %v1281 = vpop.f32.mrf.mxu0
    %1282 = vdwg.mxu0
    %1283 = vmatpush.bf16.msra.mxu0 %v499
    %1284 = vmatpush.bf16.msra.mxu0 %v496
    %1285 = vmatpush.bf16.msra.mxu0 %v493
    %1286 = vmatpush.bf16.msra.mxu0 %v490
    %1287 = vmatpush.bf16.msra.mxu0 %v487
    %1288 = vmatpush.bf16.msra.mxu0 %v484
    %1289 = vmatpush.bf16.msra.mxu0 %v481
    %1290 = vmatpush.bf16.msra.mxu0 %v478
    %1291 = vmatmul.bf16.gmra.mxu0 %v1256
    %v1292 = vpop.f32.mrf.mxu0
    %v1293 = vadd.f32 %v392, %v1292
    %v1294 = vpop.f32.mrf.mxu0
    %1295 = vdwg.mxu0
    %v1296 = vadd.f32 %v1253, %v1267
    %v1297 = vsub.f32 0.0, %v1296
    %v1298 = vmul.f32 %v1297, 1.442695
    %v1299 = vpow.pop %v1298
    %v1300 = vadd.f32 %v1299, 1.0
    %v1301 = vrcp.pop %v1300
    %v1302 = vmul.f32 %v1300, %v1301
    %v1303 = vsub.f32 1.0, %v1302
    %v1304 = vmul.f32 %v1301, %v1303
    %v1305 = vadd.f32 %v1301, %v1304
    %vm1306 = vweird.f32 %v1300
    %vm1307 = vweird.f32 %v1301
    %vm1308 = vmor %vm1306, %vm1307
    %v1309 = vsel %vm1308, %v1301, %v1305
    %v1310 = vand.u32 2147483647, %v1300
    %vm1311 = vcmp.eq.f32.partialorder %v1310, 8.507059e+37
    %v1312 = vand.u32 %v1300, 2147483648
    %v1313 = vor.u32 1.1754944e-38, %v1312
    %v1314 = vsel %vm1311, %v1313, %v1309
    %v1315 = vmul.f32 1.0, %v1314
    %v1316 = vadd.f32 %v1254, %v1280
    %v1317 = vsub.f32 0.0, %v1316
    %v1318 = vmul.f32 %v1317, 1.442695
    %v1319 = vpow.pop %v1318
    %v1320 = vadd.f32 %v1319, 1.0
    %v1321 = vrcp.pop %v1320
    %v1322 = vmul.f32 %v1320, %v1321
    %v1323 = vsub.f32 1.0, %v1322
    %v1324 = vmul.f32 %v1321, %v1323
    %v1325 = vadd.f32 %v1321, %v1324
    %vm1326 = vweird.f32 %v1320
    %vm1327 = vweird.f32 %v1321
    %vm1328 = vmor %vm1326, %vm1327
    %v1329 = vsel %vm1328, %v1321, %v1325
    %v1330 = vand.u32 2147483647, %v1320
    %vm1331 = vcmp.eq.f32.partialorder %v1330, 8.507059e+37
    %v1332 = vand.u32 %v1320, 2147483648
    %v1333 = vor.u32 1.1754944e-38, %v1332
    %v1334 = vsel %vm1331, %v1333, %v1329
    %v1335 = vmul.f32 1.0, %v1334
    %v1336 = vmul.f32 %v1315, %v1293
    %v1337 = vadd.f32 %v1255, %v1336
    %v1338 = vtanh.pop %v1337
    %v1339 = vsub.f32 1.0, %v1335
    %v1340 = vmul.f32 %v1339, %v1338
    %v1341 = vmul.f32 %v1335, %v1246
    %v1342 = vadd.f32 %v1340, %v1341
    %s1343 = sadd.s32 %s25, 7
    %v1344 = vstv %s1343
    %vm1345 = vcmp.gt.s32.totalorder %v380, %v1344
    %v1346 = vsel %vm1345, 1, 0
    %1347 = vset.pattern.permute.xlu0 0
    %1348 = vperm.xlu0 %1347, %v1346
    %v1349 = vpop.permute.xlu0 %1348
    %vm1350 = vcmp.eq.s32.totalorder %v1349, 1
    %v1351 = vsel %vm1350, %v1342, %v1246
    %v1352 = vsel %vm1350, %v1342, 0.0
    %s1353 = scalar_lea.vmem %s7, 56
    %1354 = vst [vmem:[%s1353] sm:$0xff] %v1352
    %1355 = vst [vmem:[#allocation2] sm:$0xff] %v1351
  $region33: #{state_transition_forward.2} parent=0 // pred_fallthru
    _
  %s1356 = sld [smem:[#allocation5]]
  %p1357 = scmp.ge.s32.totalorder %s25, %s1356
  // Predicated region
  $region34: #{state_transition_forward.2} parent=0 // pred_check
    %p1358 = pneg %p1357
  $region35: #{state_transition_forward.2} parent=0 // pred_check_branch
    %1360 = sbr.rel (%p1358) target = $region37
  $region36: #{state_transition_forward.2} parent=0 // pred_region
    %1361 = vst [vmem:[%s7] sm:$0xff] 0.0
    %1362 = vst [vmem:[%s7 + $0x8] sm:$0xff] 0.0
    %1363 = vst [vmem:[%s7 + $0x10] sm:$0xff] 0.0
    %1364 = vst [vmem:[%s7 + $0x18] sm:$0xff] 0.0
    %1365 = vst [vmem:[%s7 + $0x20] sm:$0xff] 0.0
    %1366 = vst [vmem:[%s7 + $0x28] sm:$0xff] 0.0
    %1367 = vst [vmem:[%s7 + $0x30] sm:$0xff] 0.0
    %1368 = vst [vmem:[%s7 + $0x38] sm:$0xff] 0.0
  $region37: #{state_transition_forward.2} parent=0 // pred_fallthru
    _
  // Predicated region
  $region38: #{state_transition_forward.2} parent=0 // pred_check
    _
  $region39: #{state_transition_forward.2} parent=0 // pred_check_branch
    %1370 = sbr.rel (0) target = $region41
  $region40: #{state_transition_forward.2} parent=0 // pred_region
    _
  $region41: #{state_transition_forward.2} parent=0 // pred_fallthru
    _
  // Predicated region
  $region42: #{state_transition_forward.2} parent=0 // pred_check
    _
  $region43: #{state_transition_forward.2} parent=0 // pred_check_branch
    %1372 = sbr.rel (0) target = $region45
  $region44: #{state_transition_forward.2} parent=0 // pred_region
    _
  $region45: #{state_transition_forward.2} parent=0 // pred_fallthru
    _

</llo_original>
